<compile_context>
chip_gen: v5e
topology: v5e:2x2
jax: 0.10.0
libtpu: 0.0.40
codegen_flags: <defaults>
</compile_context>

<pallas_src>
import jax
import jax.numpy as jnp
from jax.experimental import pallas as pl
from jax.experimental.pallas import tpu as pltpu

_NEG = -1e30  # additive mask for invalid/padded time positions (bf16/f32 safe)


def _round_up(x, m):
    return ((x + m - 1) // m) * m


def cnn_text_kernel(x_ref, w_ref, mask_ref, b_ref, fcw_ref, fcb_ref, o_ref,
                    unf_ref):
    tn, l_pad, d = x_ref.shape
    _, lout_pad, kd_pad = unf_ref.shape
    co_tot = w_ref.shape[1]
    k_max = l_pad - lout_pad + 1
    kd = k_max * d

    x = x_ref[...]                                           # (TN, L_pad, D)

    # im2col into a lane-dense, sublane-aligned scratch: band k holds
    # x[:, k:k+lout_pad, :] in lanes [k*D, (k+1)*D).
    for k in range(k_max):
        unf_ref[:, :, k * d:(k + 1) * d] = x[:, k:k + lout_pad, :]
    if kd_pad > kd:
        # K-padding lanes must be 0 (not NaN garbage) before the fused matmul.
        # Re-zero every step: under megacore "parallel" sharding not every
        # core executes grid step 0, so a one-time init is unsafe.
        unf_ref[:, :, kd:] = jnp.zeros((tn, lout_pad, kd_pad - kd),
                                       unf_ref.dtype)

    # One fused MXU matmul covers all conv branches (f32 accumulation).
    # Reshape is layout-preserving: lout_pad is a sublane multiple, kd_pad a
    # 128-lane multiple.
    conv = jnp.dot(unf_ref[...].reshape(tn * lout_pad, kd_pad), w_ref[...],
                   preferred_element_type=jnp.float32)
    conv = conv.reshape(tn, lout_pad, co_tot)

    # Mask invalid / padded time rows, then max over time. The epilogue runs
    # in the mask's dtype (bf16 on the bf16 path: halves the biggest VMEM
    # buffer; -1e30 is bf16-representable and max is order-exact).
    conv = conv.astype(mask_ref.dtype) + mask_ref[...]       # (lout_pad, co_tot) bcast
    feat = jnp.max(conv, axis=1).astype(jnp.float32)         # (TN, co_tot)

    # Bias + ReLU AFTER max-over-time (ReLU monotone, bias time-invariant ->
    # numerically identical, ~lout_pad x less VPU work), all f32.
    feat = jnp.maximum(feat + b_ref[...], 0.0)

    # TODO(synk): nn.Dropout is identity at inference time; not applied here.
    logit = jnp.dot(feat, fcw_ref[...],
                    preferred_element_type=jnp.float32) + fcb_ref[...]
    o_ref[...] = logit                                       # (TN, C_pad) f32


def _vmem_budget_bytes():
    """(tile budget, explicit vmem_limit) — generation aware.

    v5e/v6e: 128 MiB physical VMEM -> ~48 MiB tile budget, 64 MiB limit.
    v7x:      64 MiB physical      -> ~40 MiB tile budget, 56 MiB limit.
    Falls back to the conservative (v7x) numbers if the query fails.
    """
    phys = 64 * 1024 * 1024
    try:
        phys = int(pltpu.get_tpu_info().vmem_capacity_bytes)
    except Exception:
        pass
    limit = min(64 * 1024 * 1024, phys - 8 * 1024 * 1024)
    return limit - 16 * 1024 * 1024, limit


def _choose_batch_tile(n, l_pad, d, lout_pad, kd_pad, co_tot, c_pad,
                       in_itemsize, epi_itemsize, budget):
    """Padding-aware VMEM accounting: the (TN, l_pad, 32) x tile pads to
    128 lanes and a sublane multiple (4-7x raw bytes), the im2col scratch is
    256 lanes wide, and the f32 conv accumulator + its epilogue-dtype copy are
    counted explicitly. Double buffers on x / output / params."""
    sub = 8 * (4 // in_itemsize)          # sublane packing: 8 (f32) / 16 (bf16)

    def vmem_use(tn):
        x_tile = tn * _round_up(l_pad, sub) * _round_up(d, 128) * in_itemsize
        unf = tn * lout_pad * kd_pad * in_itemsize            # scratch
        conv32 = tn * lout_pad * co_tot * 4                   # f32 accumulator
        convep = tn * lout_pad * co_tot * epi_itemsize        # masked copy
        out_t = tn * _round_up(c_pad, 128) * 4
        prm = (kd_pad * co_tot * in_itemsize
               + lout_pad * co_tot * epi_itemsize
               + co_tot * 4 + co_tot * c_pad * 4 + c_pad * 4)
        return (2 * x_tile + 2 * out_t + 2 * prm
                + 2 * unf + conv32 + convep)

    tn = 128          # MXU M = tn*lout_pad is already big; keeps v5e epilogue small
    while tn > 8 and vmem_use(tn) > budget:
        tn //= 2
    # >=4 grid steps when the batch allows: feeds both v7x TensorCores via the
    # "parallel" axis and keeps the x DMA overlapped with compute.
    tn = min(tn, max(8, _round_up(-(-n // 4), 8)))
    return max(8, tn)


def cnn_text_forward(x_tokens, params, Ks=(3, 4, 5), *,
                     compute_dtype=jnp.bfloat16, batch_tile=None):
    """x_tokens: (N, L) int32 token ids. Returns logits (N, C) float32.

    compute_dtype=bfloat16 is the v6e/v7x MXU sweet spot (f32 accumulation,
    f32 bias/ReLU/fc epilogue); use float32 on v5e (no bf16 VPU)."""
    n, l = x_tokens.shape
    d = params["embed"].shape[1]
    co = params[f"w{Ks[0]}"].shape[2]
    c = params["fc_w"].shape[1]
    k_max, k_min = max(Ks), min(Ks)
    if l < k_max:
        raise ValueError(f"sequence length {l} must be >= max kernel size {k_max}")

    in_itemsize = jnp.dtype(compute_dtype).itemsize
    epi_dtype = compute_dtype if in_itemsize < 4 else jnp.float32
    epi_itemsize = jnp.dtype(epi_dtype).itemsize
    sub = 8 * (4 // in_itemsize)            # sublane multiple for compute dtype

    lout = l - k_min + 1                    # true conv positions (widest branch)
    lout_pad = _round_up(lout, sub)         # sublane-aligned time axis
    l_pad = lout_pad + k_max - 1            # zero time-pad so every band is in-bounds
    kd = k_max * d
    kd_pad = _round_up(kd, 128)             # lane-dense im2col rows (exactly 2 vregs)
    co_pad = _round_up(co, 128)             # lane-dense per-branch output width
    co_tot = len(Ks) * co_pad
    c_pad = _round_up(c, 128)

    budget, vmem_limit = _vmem_budget_bytes()
    tn = batch_tile if batch_tile is not None else _choose_batch_tile(
        n, l_pad, d, lout_pad, kd_pad, co_tot, c_pad,
        in_itemsize, epi_itemsize, budget)
    tn = max(8, _round_up(tn, 8))
    n_pad = _round_up(n, tn)

    # ---- embedding gather (glue, stays in JAX) + batch/time zero padding ----
    emb = jnp.take(params["embed"], x_tokens, axis=0).astype(compute_dtype)
    emb = jnp.pad(emb, ((0, n_pad - n), (0, l_pad - l), (0, 0)))

    # ---- fuse & lane-pad parameters (done in JAX; constant-folds under jit) --
    w_blocks, b_blocks, m_blocks, fc_blocks = [], [], [], []
    t_idx = jnp.arange(lout_pad, dtype=jnp.int32)[:, None]   # (lout_pad, 1)
    for j, k in enumerate(Ks):
        w = params[f"w{k}"].astype(jnp.float32).reshape(k * d, co)
        w_blocks.append(jnp.pad(w, ((0, kd_pad - k * d), (0, co_pad - co))))
        b = params[f"b{k}"].astype(jnp.float32).reshape(1, co)
        b_blocks.append(jnp.pad(b, ((0, 0), (0, co_pad - co))))
        # valid conv positions for this branch; also kills padded rows t>=lout.
        valid = t_idx <= (l - k)
        m_blocks.append(jnp.broadcast_to(
            jnp.where(valid, 0.0, _NEG).astype(epi_dtype), (lout_pad, co_pad)))
        fcw = params["fc_w"][j * co:(j + 1) * co, :].astype(jnp.float32)
        fc_blocks.append(jnp.pad(fcw, ((0, co_pad - co), (0, c_pad - c))))
    w_fused = jnp.concatenate(w_blocks, axis=1).astype(compute_dtype)  # (kd_pad, co_tot)
    b_fused = jnp.concatenate(b_blocks, axis=1)                        # (1, co_tot) f32
    mask = jnp.concatenate(m_blocks, axis=1)                           # (lout_pad, co_tot)
    fc_w = jnp.concatenate(fc_blocks, axis=0)                          # (co_tot, c_pad) f32
    fc_b = jnp.pad(params["fc_b"].astype(jnp.float32).reshape(1, c),
                   ((0, 0), (0, c_pad - c)))                           # (1, c_pad) f32

    grid = (n_pad // tn,)
    flops = 2 * n_pad * lout_pad * kd_pad * co_tot + 2 * n_pad * co_tot * c_pad
    bytes_accessed = (emb.size * in_itemsize + w_fused.size * in_itemsize
                      + mask.size * epi_itemsize + b_fused.size * 4
                      + fc_w.size * 4 + fc_b.size * 4 + n_pad * c_pad * 4)

    # NOTE: the five constant-index parameter inputs are tiny (<1 MiB total);
    # pl.Buffered(1) single-buffering would save only that much VMEM, so it's
    # intentionally not used to keep the lowering simple.
    out = pl.pallas_call(
        cnn_text_kernel,
        out_shape=jax.ShapeDtypeStruct((n_pad, c_pad), jnp.float32),
        grid=grid,
        in_specs=[
            pl.BlockSpec((tn, l_pad, d), lambda i: (i, 0, 0)),    # x: batch-tiled
            pl.BlockSpec((kd_pad, co_tot), lambda i: (0, 0)),     # fused conv W
            pl.BlockSpec((lout_pad, co_tot), lambda i: (0, 0)),   # validity mask
            pl.BlockSpec((1, co_tot), lambda i: (0, 0)),          # fused conv bias
            pl.BlockSpec((co_tot, c_pad), lambda i: (0, 0)),      # fc weight (f32)
            pl.BlockSpec((1, c_pad), lambda i: (0, 0)),           # fc bias (f32)
        ],
        out_specs=pl.BlockSpec((tn, c_pad), lambda i: (i, 0)),
        scratch_shapes=[pltpu.VMEM((tn, lout_pad, kd_pad), compute_dtype)],
        compiler_params=pltpu.CompilerParams(
            dimension_semantics=("parallel",),
            vmem_limit_bytes=vmem_limit),
        cost_estimate=pl.CostEstimate(flops=flops, transcendentals=0,
                                      bytes_accessed=bytes_accessed),
    )(emb, w_fused, mask, b_fused, fc_w, fc_b)
    return out[:n, :c]


def _reference_forward(x_tokens, params, Ks=(3, 4, 5)):
    """Pure-JAX reference mirroring the PyTorch forward (eval mode)."""
    emb = jnp.take(params["embed"], x_tokens, axis=0).astype(jnp.float32)
    n, l, d = emb.shape
    feats = []
    for k in Ks:
        w, b = params[f"w{k}"], params[f"b{k}"]
        lout = l - k + 1
        acc = jnp.zeros((n, lout, w.shape[2]), jnp.float32)
        for kk in range(k):
            acc = acc + jnp.einsum("nld,dc->nlc", emb[:, kk:kk + lout, :],
                                   w[kk], precision="highest")
        acc = jax.nn.relu(acc + b[None, :, :])
        feats.append(jnp.max(acc, axis=1))
    cat = jnp.concatenate(feats, axis=1)
    return jnp.dot(cat, params["fc_w"], precision="highest") + params["fc_b"]


if __name__ == "__main__":
    # Small config consistent with CNNText.__init__:
    #   V=embed_num, D=embed_dim, C=class_num, Co=kernel_num, Ks=kernel_sizes
    V, D, C, Co = 20, 32, 4, 8
    Ks = (3, 4, 5)
    N, L = 16, 16

    key = jax.random.PRNGKey(0)
    ks = jax.random.split(key, 10)
    params = {
        "embed": jax.random.normal(ks[0], (V, D), jnp.float32),
        "w3": 0.1 * jax.random.normal(ks[1], (3, D, Co), jnp.float32),
        "b3": 0.1 * jax.random.normal(ks[2], (1, Co), jnp.float32),
        "w4": 0.1 * jax.random.normal(ks[3], (4, D, Co), jnp.float32),
        "b4": 0.1 * jax.random.normal(ks[4], (1, Co), jnp.float32),
        "w5": 0.1 * jax.random.normal(ks[5], (5, D, Co), jnp.float32),
        "b5": 0.1 * jax.random.normal(ks[6], (1, Co), jnp.float32),
        "fc_w": 0.1 * jax.random.normal(ks[7], (len(Ks) * Co, C), jnp.float32),
        "fc_b": 0.1 * jax.random.normal(ks[8], (1, C), jnp.float32),
    }
    x_tokens = jax.random.randint(ks[9], (N, L), 0, V, dtype=jnp.int32)

    ref = _reference_forward(x_tokens, params, Ks)

    # f32 path (tight check); batch_tile=8 -> 2-step pipelined grid.
    out_f32 = jax.block_until_ready(
        cnn_text_forward(x_tokens, params, Ks,
                         compute_dtype=jnp.float32, batch_tile=8))
    assert out_f32.shape == (N, C)
    assert jnp.allclose(out_f32, ref, atol=2e-3, rtol=2e-3), \
        f"f32 max err {float(jnp.max(jnp.abs(out_f32 - ref)))}"

    # bf16 path (preferred MXU dtype on v6e/v7x), f32 accumulation, f32 fc.
    out_bf16 = jax.block_until_ready(
        cnn_text_forward(x_tokens, params, Ks, compute_dtype=jnp.bfloat16))
    assert out_bf16.shape == (N, C)
    assert jnp.allclose(out_bf16, ref, atol=7.5e-2, rtol=7.5e-2), \
        f"bf16 max err {float(jnp.max(jnp.abs(out_bf16 - ref)))}"

    print("KERNEL_OK")
</pallas_src>

<mosaic_0001>
module attributes {stable_mosaic.version = 11 : i64} {
  func.func @cnn_text_kernel(%arg0: i32, %arg1: memref<8x20x32xf32, #tpu.memory_space<vmem>>, %arg2: memref<256x384xf32, #tpu.memory_space<vmem>>, %arg3: memref<16x384xf32, #tpu.memory_space<vmem>>, %arg4: memref<1x384xf32, #tpu.memory_space<vmem>>, %arg5: memref<384x128xf32, #tpu.memory_space<vmem>>, %arg6: memref<1x128xf32, #tpu.memory_space<vmem>>, %arg7: memref<8x128xf32, #tpu.memory_space<vmem>>, %arg8: memref<8x16x256xf32, #tpu.memory_space<vmem>>) attributes {dimension_semantics = [#tpu.dimension_semantics<parallel>], iteration_bounds = array<i64: 2>, scalar_prefetch = 0 : i64, scratch_operands = 1 : i64, tpu.core_type = #tpu.core_type<tc>, window_params = [{transform_indices = @transform_0, window_bounds = array<i64: 8, 20, 32>}, {pipeline_mode = #tpu.pipeline_mode<synchronous>, transform_indices = @transform_1, window_bounds = array<i64: 256, 384>}, {pipeline_mode = #tpu.pipeline_mode<synchronous>, transform_indices = @transform_2, window_bounds = array<i64: 16, 384>}, {pipeline_mode = #tpu.pipeline_mode<synchronous>, transform_indices = @transform_3, window_bounds = array<i64: 1, 384>}, {pipeline_mode = #tpu.pipeline_mode<synchronous>, transform_indices = @transform_4, window_bounds = array<i64: 384, 128>}, {pipeline_mode = #tpu.pipeline_mode<synchronous>, transform_indices = @transform_5, window_bounds = array<i64: 1, 128>}, {transform_indices = @transform_6, window_bounds = array<i64: 8, 128>}]} {
    %c0 = arith.constant 0 : index
    %c0_0 = arith.constant 0 : index
    %c0_1 = arith.constant 0 : index
    %0 = vector.load %arg1[%c0, %c0_0, %c0_1] : memref<8x20x32xf32, #tpu.memory_space<vmem>>, vector<8x20x32xf32>
    %1 = vector.extract_strided_slice %0 {offsets = [0, 0, 0], sizes = [8, 16, 32], strides = [1, 1, 1]} : vector<8x20x32xf32> to vector<8x16x32xf32>
    %c0_2 = arith.constant 0 : index
    %c0_3 = arith.constant 0 : index
    %c0_4 = arith.constant 0 : index
    %2 = vector.load %arg8[%c0_2, %c0_3, %c0_4] : memref<8x16x256xf32, #tpu.memory_space<vmem>>, vector<8x16x32xf32>
    tpu.vector_store %arg8[%c0_2, %c0_3, %c0_4], %1 {strides = array<i32>} : memref<8x16x256xf32, #tpu.memory_space<vmem>>, vector<8x16x32xf32>,
    %3 = vector.extract_strided_slice %0 {offsets = [0, 1, 0], sizes = [8, 16, 32], strides = [1, 1, 1]} : vector<8x20x32xf32> to vector<8x16x32xf32>
    %c0_5 = arith.constant 0 : index
    %c0_6 = arith.constant 0 : index
    %c32 = arith.constant 32 : index
    %4 = vector.load %arg8[%c0_5, %c0_6, %c32] : memref<8x16x256xf32, #tpu.memory_space<vmem>>, vector<8x16x32xf32>
    tpu.vector_store %arg8[%c0_5, %c0_6, %c32], %3 {strides = array<i32>} : memref<8x16x256xf32, #tpu.memory_space<vmem>>, vector<8x16x32xf32>,
    %5 = vector.extract_strided_slice %0 {offsets = [0, 2, 0], sizes = [8, 16, 32], strides = [1, 1, 1]} : vector<8x20x32xf32> to vector<8x16x32xf32>
    %c0_7 = arith.constant 0 : index
    %c0_8 = arith.constant 0 : index
    %c64 = arith.constant 64 : index
    %6 = vector.load %arg8[%c0_7, %c0_8, %c64] : memref<8x16x256xf32, #tpu.memory_space<vmem>>, vector<8x16x32xf32>
    tpu.vector_store %arg8[%c0_7, %c0_8, %c64], %5 {strides = array<i32>} : memref<8x16x256xf32, #tpu.memory_space<vmem>>, vector<8x16x32xf32>,
    %7 = vector.extract_strided_slice %0 {offsets = [0, 3, 0], sizes = [8, 16, 32], strides = [1, 1, 1]} : vector<8x20x32xf32> to vector<8x16x32xf32>
    %c0_9 = arith.constant 0 : index
    %c0_10 = arith.constant 0 : index
    %c96 = arith.constant 96 : index
    %8 = vector.load %arg8[%c0_9, %c0_10, %c96] : memref<8x16x256xf32, #tpu.memory_space<vmem>>, vector<8x16x32xf32>
    tpu.vector_store %arg8[%c0_9, %c0_10, %c96], %7 {strides = array<i32>} : memref<8x16x256xf32, #tpu.memory_space<vmem>>, vector<8x16x32xf32>,
    %9 = vector.extract_strided_slice %0 {offsets = [0, 4, 0], sizes = [8, 16, 32], strides = [1, 1, 1]} : vector<8x20x32xf32> to vector<8x16x32xf32>
    %c0_11 = arith.constant 0 : index
    %c0_12 = arith.constant 0 : index
    %c128 = arith.constant 128 : index
    %10 = vector.load %arg8[%c0_11, %c0_12, %c128] : memref<8x16x256xf32, #tpu.memory_space<vmem>>, vector<8x16x32xf32>
    tpu.vector_store %arg8[%c0_11, %c0_12, %c128], %9 {strides = array<i32>} : memref<8x16x256xf32, #tpu.memory_space<vmem>>, vector<8x16x32xf32>,
    %cst = arith.constant 0.000000e+00 : f32
    %11 = vector.broadcast %cst : f32 to vector<8x16x96xf32>
    %c0_13 = arith.constant 0 : index
    %c0_14 = arith.constant 0 : index
    %c160 = arith.constant 160 : index
    %12 = vector.load %arg8[%c0_13, %c0_14, %c160] : memref<8x16x256xf32, #tpu.memory_space<vmem>>, vector<8x16x96xf32>
    tpu.vector_store %arg8[%c0_13, %c0_14, %c160], %11 {strides = array<i32>} : memref<8x16x256xf32, #tpu.memory_space<vmem>>, vector<8x16x96xf32>,
    %c0_15 = arith.constant 0 : index
    %c0_16 = arith.constant 0 : index
    %c0_17 = arith.constant 0 : index
    %13 = vector.load %arg8[%c0_15, %c0_16, %c0_17] : memref<8x16x256xf32, #tpu.memory_space<vmem>>, vector<8x16x256xf32>
    %14 = vector.shape_cast %13 : vector<8x16x256xf32> to vector<128x256xf32>
    %c0_18 = arith.constant 0 : index
    %c0_19 = arith.constant 0 : index
    %15 = vector.load %arg2[%c0_18, %c0_19] : memref<256x384xf32, #tpu.memory_space<vmem>>, vector<256x384xf32>
    %cst_20 = arith.constant dense<0.000000e+00> : vector<128x384xf32>
    %16 = tpu.matmul %14, %15, %cst_20 {dimension_numbers = #tpu.dot_dimension_numbers<[1], [0], [0], [1], [0, 0, 1, 1], [], []>} : vector<128x256xf32>, vector<256x384xf32>, vector<128x384xf32> -> vector<128x384xf32>
    %17 = vector.shape_cast %16 : vector<128x384xf32> to vector<8x16x384xf32>
    %c0_21 = arith.constant 0 : index
    %c0_22 = arith.constant 0 : index
    %18 = vector.load %arg3[%c0_21, %c0_22] : memref<16x384xf32, #tpu.memory_space<vmem>>, vector<16x384xf32>
    %19 = vector.shape_cast %18 : vector<16x384xf32> to vector<1x16x384xf32>
    %20 = vector.broadcast %19 : vector<1x16x384xf32> to vector<8x16x384xf32>
    %21 = arith.addf %17, %20 : vector<8x16x384xf32>
    %cst_23 = arith.constant dense<0xFF800000> : vector<8x384xf32>
    %22 = vector.multi_reduction <maximumf>, %21, %cst_23 [1] : vector<8x16x384xf32> to vector<8x384xf32>
    %c0_24 = arith.constant 0 : index
    %c0_25 = arith.constant 0 : index
    %23 = vector.load %arg4[%c0_24, %c0_25] : memref<1x384xf32, #tpu.memory_space<vmem>>, vector<1x384xf32>
    %24 = vector.broadcast %23 : vector<1x384xf32> to vector<8x384xf32>
    %25 = arith.addf %22, %24 : vector<8x384xf32>
    %cst_26 = arith.constant 0.000000e+00 : f32
    %26 = vector.broadcast %cst_26 : f32 to vector<8x384xf32>
    %27 = arith.maximumf %25, %26 : vector<8x384xf32>
    %c0_27 = arith.constant 0 : index
    %c0_28 = arith.constant 0 : index
    %28 = vector.load %arg5[%c0_27, %c0_28] : memref<384x128xf32, #tpu.memory_space<vmem>>, vector<384x128xf32>
    %cst_29 = arith.constant dense<0.000000e+00> : vector<8x128xf32>
    %29 = tpu.matmul %27, %28, %cst_29 {dimension_numbers = #tpu.dot_dimension_numbers<[1], [0], [0], [1], [0, 0, 1, 1], [], []>} : vector<8x384xf32>, vector<384x128xf32>, vector<8x128xf32> -> vector<8x128xf32>
    %c0_30 = arith.constant 0 : index
    %c0_31 = arith.constant 0 : index
    %30 = vector.load %arg6[%c0_30, %c0_31] : memref<1x128xf32, #tpu.memory_space<vmem>>, vector<1x128xf32>
    %31 = vector.broadcast %30 : vector<1x128xf32> to vector<8x128xf32>
    %32 = arith.addf %29, %31 : vector<8x128xf32>
    %c0_32 = arith.constant 0 : index
    %c0_33 = arith.constant 0 : index
    %33 = vector.load %arg7[%c0_32, %c0_33] : memref<8x128xf32, #tpu.memory_space<vmem>>, vector<8x128xf32>
    tpu.vector_store %arg7[%c0_32, %c0_33], %32 {strides = array<i32>} : memref<8x128xf32, #tpu.memory_space<vmem>>, vector<8x128xf32>,
    return
  }
  func.func @transform_0(%arg0: i32) -> (i32, i32, i32) {
    %c0_i32 = arith.constant 0 : i32
    %c0_i32_0 = arith.constant 0 : i32
    %c0_i32_1 = arith.constant 0 : i32
    return %arg0, %c0_i32, %c0_i32_0 : i32, i32, i32
  }
  func.func @transform_1(%arg0: i32) -> (i32, i32) {
    %c0_i32 = arith.constant 0 : i32
    %c0_i32_0 = arith.constant 0 : i32
    %c0_i32_1 = arith.constant 0 : i32
    return %c0_i32, %c0_i32_0 : i32, i32
  }
  func.func @transform_2(%arg0: i32) -> (i32, i32) {
    %c0_i32 = arith.constant 0 : i32
    %c0_i32_0 = arith.constant 0 : i32
    %c0_i32_1 = arith.constant 0 : i32
    return %c0_i32, %c0_i32_0 : i32, i32
  }
  func.func @transform_3(%arg0: i32) -> (i32, i32) {
    %c0_i32 = arith.constant 0 : i32
    %c0_i32_0 = arith.constant 0 : i32
    %c0_i32_1 = arith.constant 0 : i32
    return %c0_i32, %c0_i32_0 : i32, i32
  }
  func.func @transform_4(%arg0: i32) -> (i32, i32) {
    %c0_i32 = arith.constant 0 : i32
    %c0_i32_0 = arith.constant 0 : i32
    %c0_i32_1 = arith.constant 0 : i32
    return %c0_i32, %c0_i32_0 : i32, i32
  }
  func.func @transform_5(%arg0: i32) -> (i32, i32) {
    %c0_i32 = arith.constant 0 : i32
    %c0_i32_0 = arith.constant 0 : i32
    %c0_i32_1 = arith.constant 0 : i32
    return %c0_i32, %c0_i32_0 : i32, i32
  }
  func.func @transform_6(%arg0: i32) -> (i32, i32) {
    %c0_i32 = arith.constant 0 : i32
    %c0_i32_0 = arith.constant 0 : i32
    return %arg0, %c0_i32 : i32, i32
  }
}

</mosaic_0001>

<llo_original>
// kernel: tpu_custom_call.1
$region0: #{tpu_custom_call.1}
  #allocation0 [shape = 'u32[]', space=smem, size = 0x4, offset = 0x4, fixed_abs, tag = 'smem constant byte address 0x4 - core index']
  #allocation1 [shape = 'u32[72,128]{1,0:T(1,128)}', space=vmem, size = 0x9000, scoped, tag = 'internal scratch']
  #allocation2 [shape = 'f32[8,16,256]{2,1,0:T(8,128)}', space=vmem, size = 0x20000, scoped, tag = 'scratch operand']
  %s0 = inlined_call_operand.vmem [shape: f32[16,20,32], index: 0, kind: input, shape index: {}]
  %s1 = inlined_call_operand.hbm [shape: f32[256,384], index: 1, kind: input, shape index: {}]
  %s2 = inlined_call_operand.vmem [shape: f32[16,384], index: 2, kind: input, shape index: {}]
  %s3 = inlined_call_operand.vmem [shape: f32[1,384], index: 3, kind: input, shape index: {}]
  %s4 = inlined_call_operand.vmem [shape: f32[384,128], index: 4, kind: input, shape index: {}]
  %s5 = inlined_call_operand.vmem [shape: f32[1,128], index: 5, kind: input, shape index: {}]
  %s6 = inlined_call_operand.hbm [shape: f32[16,128], index: 6, kind: output, shape index: {}]
  %s7 = sld [smem:[#allocation0]]
  $region61: #{tpu_custom_call.1} parent=0
    _
  %s9 = ssub.s32 1, %s7
  %s10 = scalar_select 0, %s9, %s7
  $region1: #{tpu_custom_call.1} parent=0
    #allocation3 [shape = 'u8[393216]{0}', space=vmem, size = 0x60000, scoped, tag = 'input window, operand 1, single buffered']
    #allocation4 [shape = 's32[2]{0}', space=sflag, size = 0x8, scoped, tag = 'scoped memory for tpu_custom_call.1']
    #allocation5 [shape = 's32[2]{0}', space=sflag, size = 0x8, scoped, tag = 'scoped memory for tpu_custom_call.1']
    #allocation6 [shape = 'u8[8192]{0}', space=vmem, size = 0x2000, scoped, tag = 'output window, operand 0']
    %11 = vsyncpa [#allocation4], 0
    %12 = vsyncpa [#allocation5], 0
    %s13 = scalar_lea.sflag [#allocation5], 1
    %14 = vsyncpa %s13, 0
    loop: start=0, step=1, limit=4
    $region2: #{tpu_custom_call.1} parent=1 // loop_pre_header
      _
    $region3: #{tpu_custom_call.1} parent=1 // loop_header
      %s16 = sphi 0, %s20
      %p17 = scmp.ge.s32.totalorder %s16, 4
      %s26 = sphi 0, %s28
      %s29 = sphi 0, %s26
      %s30 = sphi 0, %s29
      %s46 = sphi 0, %s30
      %s50 = sphi 0, %s50
      %s52 = sphi 0, %s50
      %s53 = sphi 0, %s52
      %s67 = sphi 0, %s53
      %s71 = sphi 0, %s71
      %s73 = sphi 0, %s71
      %s74 = sphi 0, %s73
      %s88 = sphi 0, %s74
      %s92 = sphi 0, %s92
      %s94 = sphi 0, %s92
      %s95 = sphi 0, %s94
      %s109 = sphi 0, %s95
      %s113 = sphi 0, %s113
      %s115 = sphi 0, %s113
      %s116 = sphi 0, %s115
      %s130 = sphi 0, %s116
      %s134 = sphi 0, %s134
      %s136 = sphi 0, %s134
      %s137 = sphi 0, %s136
      %s151 = sphi 0, %s137
      %s157 = sphi 0, %s159
      %s160 = sphi 0, %s157
      %s161 = sphi 0, %s160
      %s177 = sphi 0, %s161
    $region4: #{tpu_custom_call.1} parent=1 // loop_header_branch
      %19 = sbr.rel (%p17) target = $region8
    $region5: #{tpu_custom_call.1} parent=1 // loop_body
      %s21 = ssub.s32 %s16, 1
      %s22 = ssub.s32 %s16, 2
      %s23 = sadd.s32 %s16, 1
      %s24 = ssub.s32 %s16, %s23
      %p25 = scmp.eq.s32.totalorder %s24, 0
      %s27 = sadd.s32 %s26, 1
      %s28 = scalar_select %p25, %s26, %s27
      %p31 = pneg %p25
      %p32 = scmp.eq.s32.totalorder %s16, 1
      %p33 = por %p31, %p32
      %p34 = scmp.ne.s32.totalorder %s26, %s29
      %p35 = scmp.eq.s32.totalorder %s16, 0
      %p36 = por %p34, %p35
      %p37 = scmp.ne.s32.totalorder %s26, %s29
      %p38 = scmp.eq.s32.totalorder %s21, 1
      %p39 = por %p37, %p38
      %p40 = scmp.ne.s32.totalorder %s29, %s30
      %p41 = scmp.eq.s32.totalorder %s21, 0
      %p42 = por %p40, %p41
      %p43 = scmp.ne.s32.totalorder %s29, %s30
      %p44 = scmp.eq.s32.totalorder %s22, 1
      %p45 = por %p43, %p44
      %p47 = scmp.ne.s32.totalorder %s30, %s46
      %p48 = scmp.eq.s32.totalorder %s22, 0
      %p49 = por %p47, %p48
      %s51 = sadd.s32 %s50, 1
      %p54 = scmp.eq.s32.totalorder %s16, 1
      %p55 = scmp.ne.s32.totalorder %s50, %s52
      %p56 = scmp.eq.s32.totalorder %s16, 0
      %p57 = por %p55, %p56
      %p58 = scmp.ne.s32.totalorder %s50, %s52
      %p59 = scmp.eq.s32.totalorder %s21, 1
      %p60 = por %p58, %p59
      %p61 = scmp.ne.s32.totalorder %s52, %s53
      %p62 = scmp.eq.s32.totalorder %s21, 0
      %p63 = por %p61, %p62
      %p64 = scmp.ne.s32.totalorder %s52, %s53
      %p65 = scmp.eq.s32.totalorder %s22, 1
      %p66 = por %p64, %p65
      %p68 = scmp.ne.s32.totalorder %s53, %s67
      %p69 = scmp.eq.s32.totalorder %s22, 0
      %p70 = por %p68, %p69
      %s72 = sadd.s32 %s71, 1
      %p75 = scmp.eq.s32.totalorder %s16, 1
      %p76 = scmp.ne.s32.totalorder %s71, %s73
      %p77 = scmp.eq.s32.totalorder %s16, 0
      %p78 = por %p76, %p77
      %p79 = scmp.ne.s32.totalorder %s71, %s73
      %p80 = scmp.eq.s32.totalorder %s21, 1
      %p81 = por %p79, %p80
      %p82 = scmp.ne.s32.totalorder %s73, %s74
      %p83 = scmp.eq.s32.totalorder %s21, 0
      %p84 = por %p82, %p83
      %p85 = scmp.ne.s32.totalorder %s73, %s74
      %p86 = scmp.eq.s32.totalorder %s22, 1
      %p87 = por %p85, %p86
      %p89 = scmp.ne.s32.totalorder %s74, %s88
      %p90 = scmp.eq.s32.totalorder %s22, 0
      %p91 = por %p89, %p90
      %s93 = sadd.s32 %s92, 1
      %p96 = scmp.eq.s32.totalorder %s16, 1
      %p97 = scmp.ne.s32.totalorder %s92, %s94
      %p98 = scmp.eq.s32.totalorder %s16, 0
      %p99 = por %p97, %p98
      %p100 = scmp.ne.s32.totalorder %s92, %s94
      %p101 = scmp.eq.s32.totalorder %s21, 1
      %p102 = por %p100, %p101
      %p103 = scmp.ne.s32.totalorder %s94, %s95
      %p104 = scmp.eq.s32.totalorder %s21, 0
      %p105 = por %p103, %p104
      %p106 = scmp.ne.s32.totalorder %s94, %s95
      %p107 = scmp.eq.s32.totalorder %s22, 1
      %p108 = por %p106, %p107
      %p110 = scmp.ne.s32.totalorder %s95, %s109
      %p111 = scmp.eq.s32.totalorder %s22, 0
      %p112 = por %p110, %p111
      %s114 = sadd.s32 %s113, 1
      %p117 = scmp.eq.s32.totalorder %s16, 1
      %p118 = scmp.ne.s32.totalorder %s113, %s115
      %p119 = scmp.eq.s32.totalorder %s16, 0
      %p120 = por %p118, %p119
      %p121 = scmp.ne.s32.totalorder %s113, %s115
      %p122 = scmp.eq.s32.totalorder %s21, 1
      %p123 = por %p121, %p122
      %p124 = scmp.ne.s32.totalorder %s115, %s116
      %p125 = scmp.eq.s32.totalorder %s21, 0
      %p126 = por %p124, %p125
      %p127 = scmp.ne.s32.totalorder %s115, %s116
      %p128 = scmp.eq.s32.totalorder %s22, 1
      %p129 = por %p127, %p128
      %p131 = scmp.ne.s32.totalorder %s116, %s130
      %p132 = scmp.eq.s32.totalorder %s22, 0
      %p133 = por %p131, %p132
      %s135 = sadd.s32 %s134, 1
      %p138 = scmp.eq.s32.totalorder %s16, 1
      %p139 = scmp.ne.s32.totalorder %s134, %s136
      %p140 = scmp.eq.s32.totalorder %s16, 0
      %p141 = por %p139, %p140
      %p142 = scmp.ne.s32.totalorder %s134, %s136
      %p143 = scmp.eq.s32.totalorder %s21, 1
      %p144 = por %p142, %p143
      %p145 = scmp.ne.s32.totalorder %s136, %s137
      %p146 = scmp.eq.s32.totalorder %s21, 0
      %p147 = por %p145, %p146
      %p148 = scmp.ne.s32.totalorder %s136, %s137
      %p149 = scmp.eq.s32.totalorder %s22, 1
      %p150 = por %p148, %p149
      %p152 = scmp.ne.s32.totalorder %s137, %s151
      %p153 = scmp.eq.s32.totalorder %s22, 0
      %p154 = por %p152, %p153
      %s155 = ssub.s32 %s16, %s23
      %p156 = scmp.eq.s32.totalorder %s155, 0
      %s158 = sadd.s32 %s157, 1
      %s159 = scalar_select %p156, %s157, %s158
      %p162 = pneg %p156
      %p163 = scmp.eq.s32.totalorder %s16, 1
      %p164 = por %p162, %p163
      %p165 = scmp.ne.s32.totalorder %s157, %s160
      %p166 = scmp.eq.s32.totalorder %s16, 0
      %p167 = por %p165, %p166
      %p168 = scmp.ne.s32.totalorder %s157, %s160
      %p169 = scmp.eq.s32.totalorder %s21, 1
      %p170 = por %p168, %p169
      %p171 = scmp.ne.s32.totalorder %s160, %s161
      %p172 = scmp.eq.s32.totalorder %s21, 0
      %p173 = por %p171, %p172
      %p174 = scmp.ne.s32.totalorder %s160, %s161
      %p175 = scmp.eq.s32.totalorder %s22, 1
      %p176 = por %p174, %p175
      %p178 = scmp.ne.s32.totalorder %s161, %s177
      %p179 = scmp.eq.s32.totalorder %s22, 0
      %p180 = por %p178, %p179
      %p181 = scmp.le.s32.totalorder 1, %s16
      %p182 = scmp.lt.s32.totalorder %s16, 3
      %p183 = pnand %p181, %p182
      %p184 = pneg %p183
      // Predicated region
      $region9: #{tpu_custom_call.1} parent=5 // pred_check
        _
      $region10: #{tpu_custom_call.1} parent=5 // pred_check_branch
        %186 = sbr.rel (%p183) target = $region12
      $region11: #{tpu_custom_call.1} parent=5 // pred_region
        %s187 = ssub.s32 %s16, 1
        // Predicated region
        $region13: #{tpu_custom_call.1} parent=11 // pred_check
          %p188 = pneg %p63
        $region14: #{tpu_custom_call.1} parent=11 // pred_check_branch
          %190 = sbr.rel (%p188) target = $region16
        $region15: #{tpu_custom_call.1} parent=11 // pred_region
          %192 = vsyncadd [#allocation4], 0
          %s193 = sshll.u32 %s1, 4
          %s194 = int_to_ptr.hbm [resolvable:$true] %s193
          %s195 = sshll.u32 [#allocation3], 4
          %s196 = int_to_ptr.vmem [resolvable:$true] %s195
          %201 = dma.hbm_to_vmem [thread:$0]  %s194, 12288, %s196, [#allocation4], 384, 384, 24
        $region16: #{tpu_custom_call.1} parent=11 // pred_fallthru
          _
        // Predicated region
        $region17: #{tpu_custom_call.1} parent=11 // pred_check
          %p202 = pneg %p84
        $region18: #{tpu_custom_call.1} parent=11 // pred_check_branch
          %204 = sbr.rel (%p202) target = $region20
        $region19: #{tpu_custom_call.1} parent=11 // pred_region
          _
        $region20: #{tpu_custom_call.1} parent=11 // pred_fallthru
          _
        // Predicated region
        $region21: #{tpu_custom_call.1} parent=11 // pred_check
          %p205 = pneg %p105
        $region22: #{tpu_custom_call.1} parent=11 // pred_check_branch
          %207 = sbr.rel (%p205) target = $region24
        $region23: #{tpu_custom_call.1} parent=11 // pred_region
          _
        $region24: #{tpu_custom_call.1} parent=11 // pred_fallthru
          _
        // Predicated region
        $region25: #{tpu_custom_call.1} parent=11 // pred_check
          %p208 = pneg %p126
        $region26: #{tpu_custom_call.1} parent=11 // pred_check_branch
          %210 = sbr.rel (%p208) target = $region28
        $region27: #{tpu_custom_call.1} parent=11 // pred_region
          _
        $region28: #{tpu_custom_call.1} parent=11 // pred_fallthru
          _
        // Predicated region
        $region29: #{tpu_custom_call.1} parent=11 // pred_check
          %p211 = pneg %p147
        $region30: #{tpu_custom_call.1} parent=11 // pred_check_branch
          %213 = sbr.rel (%p211) target = $region32
        $region31: #{tpu_custom_call.1} parent=11 // pred_region
          _
        $region32: #{tpu_custom_call.1} parent=11 // pred_fallthru
          _
      $region12: #{tpu_custom_call.1} parent=5 // pred_fallthru
        _
      %p214 = scmp.lt.s32.totalorder %s16, 2
      // Predicated region
      $region33: #{tpu_custom_call.1} parent=5 // pred_check
        %p215 = pneg %p214
      $region34: #{tpu_custom_call.1} parent=5 // pred_check_branch
        %217 = sbr.rel (%p215) target = $region36
      $region35: #{tpu_custom_call.1} parent=5 // pred_region
        // Predicated region
        $region37: #{tpu_custom_call.1} parent=35 // pred_check
          %p218 = pneg %p36
        $region38: #{tpu_custom_call.1} parent=35 // pred_check_branch
          %220 = sbr.rel (%p218) target = $region40
        $region39: #{tpu_custom_call.1} parent=35 // pred_region
          %s221 = smul.u32 8, %s16
          %p222 = scmp.lt.s32.totalorder %s221, 15
          %s223 = scalar_select %p222, %s221, 15
          %s224 = smul.addr %s223, 3
          %s225 = smul.addr %s224, 8
          %s226 = scalar_lea.vmem %s0, %s225
          %s227 = smul.u32 8, %s16
        $region40: #{tpu_custom_call.1} parent=35 // pred_fallthru
          _
      $region36: #{tpu_custom_call.1} parent=5 // pred_fallthru
        _
      %p228 = scmp.le.s32.totalorder 1, %s16
      %p229 = scmp.lt.s32.totalorder %s16, 3
      %p230 = pnand %p228, %p229
      %p231 = pneg %p230
      // Predicated region
      $region41: #{tpu_custom_call.1} parent=5 // pred_check
        _
      $region42: #{tpu_custom_call.1} parent=5 // pred_check_branch
        %233 = sbr.rel (%p230) target = $region44
      $region43: #{tpu_custom_call.1} parent=5 // pred_region
        %s234 = ssub.s32 %s16, 1
        // Predicated region
        $region45: #{tpu_custom_call.1} parent=43 // pred_check
          %p235 = pneg %p63
        $region46: #{tpu_custom_call.1} parent=43 // pred_check_branch
          %237 = sbr.rel (%p235) target = $region48
        $region47: #{tpu_custom_call.1} parent=43 // pred_region
          %239 = dma.done [#allocation4], 12288
        $region48: #{tpu_custom_call.1} parent=43 // pred_fallthru
          _
        %s240 = smul.u32 8, %s21
        %p241 = scmp.lt.s32.totalorder %s240, 15
        %s242 = scalar_select %p241, %s240, 15
        %s243 = smul.addr %s242, 3
        %s244 = smul.addr %s243, 8
        %s245 = scalar_lea.vmem %s0, %s244
        %p246 = pneg %p42
        %p247 = pneg %p39
        %p248 = pneg %p63
        %p249 = pneg %p60
        %p250 = pneg %p84
        %p251 = pneg %p81
        %p252 = pneg %p105
        %p253 = pneg %p102
        %p254 = pneg %p126
        %p255 = pneg %p123
        %p256 = pneg %p147
        %p257 = pneg %p144
        %p258 = pneg %p173
        %p259 = pneg %p170
        %s260 = sand.u32 %s160, 1
        %s261 = scalar_lea.sflag [#allocation5], %s260
        %s262 = sand.u32 %s160, 1
        %s263 = smul.addr %s262, 8
        %s264 = scalar_lea.vmem [#allocation6], %s263
        %s265 = smul.u32 8, %s21
        %p266 = scmp.lt.s32.totalorder %s265, 15
        %s267 = scalar_select %p266, %s265, 15
        %s268 = smul.addr %s267, 3
        %s269 = smul.addr %s268, 8
        %s270 = scalar_lea.vmem %s0, %s269
        %s271 = smul.u32 8, %s21
        %v272 = vld [vmem:[%s270] sm:$0xff]
        %v273 = vld [vmem:[%s270 + $0x8] sm:$0xff]
        %v274 = vld [vmem:[%s270 + $0x10] sm:$0xf]
        %v275 = vld [vmem:[%s270 + $0x18] sm:$0xff]
        %v276 = vld [vmem:[%s270 + $0x20] sm:$0xff]
        %v277 = vld [vmem:[%s270 + $0x28] sm:$0xf]
        %v278 = vld [vmem:[%s270 + $0x30] sm:$0xff]
        %v279 = vld [vmem:[%s270 + $0x38] sm:$0xff]
        %v280 = vld [vmem:[%s270 + $0x40] sm:$0xf]
        %v281 = vld [vmem:[%s270 + $0x48] sm:$0xff]
        %v282 = vld [vmem:[%s270 + $0x50] sm:$0xff]
        %v283 = vld [vmem:[%s270 + $0x58] sm:$0xf]
        %v284 = vld [vmem:[%s270 + $0x60] sm:$0xff]
        %v285 = vld [vmem:[%s270 + $0x68] sm:$0xff]
        %v286 = vld [vmem:[%s270 + $0x70] sm:$0xf]
        %v287 = vld [vmem:[%s270 + $0x78] sm:$0xff]
        %v288 = vld [vmem:[%s270 + $0x80] sm:$0xff]
        %v289 = vld [vmem:[%s270 + $0x88] sm:$0xf]
        %v290 = vld [vmem:[%s270 + $0x90] sm:$0xff]
        %v291 = vld [vmem:[%s270 + $0x98] sm:$0xff]
        %v292 = vld [vmem:[%s270 + $0xa0] sm:$0xf]
        %v293 = vld [vmem:[%s270 + $0xa8] sm:$0xff]
        %v294 = vld [vmem:[%s270 + $0xb0] sm:$0xff]
        %v295 = vld [vmem:[%s270 + $0xb8] sm:$0xf]
        %vm296 = vcmask 261120
        %297 = vst.msk [vmem:[#allocation2] sm:$0xff] %vm296, %v272
        %298 = vst.msk [vmem:[#allocation2 + $0x10] sm:$0xff] %vm296, %v273
        %299 = vst.msk [vmem:[#allocation2 + $0x20] sm:$0xff] %vm296, %v275
        %300 = vst.msk [vmem:[#allocation2 + $0x30] sm:$0xff] %vm296, %v276
        %301 = vst.msk [vmem:[#allocation2 + $0x40] sm:$0xff] %vm296, %v278
        %302 = vst.msk [vmem:[#allocation2 + $0x50] sm:$0xff] %vm296, %v279
        %303 = vst.msk [vmem:[#allocation2 + $0x60] sm:$0xff] %vm296, %v281
        %304 = vst.msk [vmem:[#allocation2 + $0x70] sm:$0xff] %vm296, %v282
        %305 = vst.msk [vmem:[#allocation2 + $0x80] sm:$0xff] %vm296, %v284
        %306 = vst.msk [vmem:[#allocation2 + $0x90] sm:$0xff] %vm296, %v285
        %307 = vst.msk [vmem:[#allocation2 + $0xa0] sm:$0xff] %vm296, %v287
        %308 = vst.msk [vmem:[#allocation2 + $0xb0] sm:$0xff] %vm296, %v288
        %309 = vst.msk [vmem:[#allocation2 + $0xc0] sm:$0xff] %vm296, %v290
        %310 = vst.msk [vmem:[#allocation2 + $0xd0] sm:$0xff] %vm296, %v291
        %311 = vst.msk [vmem:[#allocation2 + $0xe0] sm:$0xff] %vm296, %v293
        %312 = vst.msk [vmem:[#allocation2 + $0xf0] sm:$0xff] %vm296, %v294
        %vm337 = vcmask 1046528
        %v338 = vrot.slane %v272, 1
        %v339 = vrot.slane %v273, 1
        %v340 = vsel %vm337, %v338, %v339
        %v341 = vrot.slane %v274, 1
        %v342 = vsel %vm337, %v339, %v341
        %v343 = vrot.slane %v275, 1
        %v344 = vrot.slane %v276, 1
        %v345 = vsel %vm337, %v343, %v344
        %v346 = vrot.slane %v277, 1
        %v347 = vsel %vm337, %v344, %v346
        %v348 = vrot.slane %v278, 1
        %v349 = vrot.slane %v279, 1
        %v350 = vsel %vm337, %v348, %v349
        %v351 = vrot.slane %v280, 1
        %v352 = vsel %vm337, %v349, %v351
        %v353 = vrot.slane %v281, 1
        %v354 = vrot.slane %v282, 1
        %v355 = vsel %vm337, %v353, %v354
        %v356 = vrot.slane %v283, 1
        %v357 = vsel %vm337, %v354, %v356
        %v358 = vrot.slane %v284, 1
        %v359 = vrot.slane %v285, 1
        %v360 = vsel %vm337, %v358, %v359
        %v361 = vrot.slane %v286, 1
        %v362 = vsel %vm337, %v359, %v361
        %v363 = vrot.slane %v287, 1
        %v364 = vrot.slane %v288, 1
        %v365 = vsel %vm337, %v363, %v364
        %v366 = vrot.slane %v289, 1
        %v367 = vsel %vm337, %v364, %v366
        %v368 = vrot.slane %v290, 1
        %v369 = vrot.slane %v291, 1
        %v370 = vsel %vm337, %v368, %v369
        %v371 = vrot.slane %v292, 1
        %v372 = vsel %vm337, %v369, %v371
        %v373 = vrot.slane %v293, 1
        %v374 = vrot.slane %v294, 1
        %v375 = vsel %vm337, %v373, %v374
        %v376 = vrot.slane %v295, 1
        %v377 = vsel %vm337, %v374, %v376
        %378 = vrot.lane.b32.xlu0 %v340, 32
        %v379 = vpop.permute.xlu0 %378
        %380 = vrot.lane.b32.xlu0 %v342, 32
        %v381 = vpop.permute.xlu0 %380
        %382 = vrot.lane.b32.xlu0 %v345, 32
        %v383 = vpop.permute.xlu0 %382
        %384 = vrot.lane.b32.xlu0 %v347, 32
        %v385 = vpop.permute.xlu0 %384
        %386 = vrot.lane.b32.xlu0 %v350, 32
        %v387 = vpop.permute.xlu0 %386
        %388 = vrot.lane.b32.xlu0 %v352, 32
        %v389 = vpop.permute.xlu0 %388
        %390 = vrot.lane.b32.xlu0 %v355, 32
        %v391 = vpop.permute.xlu0 %390
        %392 = vrot.lane.b32.xlu0 %v357, 32
        %v393 = vpop.permute.xlu0 %392
        %394 = vrot.lane.b32.xlu0 %v360, 32
        %v395 = vpop.permute.xlu0 %394
        %396 = vrot.lane.b32.xlu0 %v362, 32
        %v397 = vpop.permute.xlu0 %396
        %398 = vrot.lane.b32.xlu0 %v365, 32
        %v399 = vpop.permute.xlu0 %398
        %400 = vrot.lane.b32.xlu0 %v367, 32
        %v401 = vpop.permute.xlu0 %400
        %402 = vrot.lane.b32.xlu0 %v370, 32
        %v403 = vpop.permute.xlu0 %402
        %404 = vrot.lane.b32.xlu0 %v372, 32
        %v405 = vpop.permute.xlu0 %404
        %406 = vrot.lane.b32.xlu0 %v375, 32
        %v407 = vpop.permute.xlu0 %406
        %408 = vrot.lane.b32.xlu0 %v377, 32
        %v409 = vpop.permute.xlu0 %408
        %vm426 = vcmask 523520
        %427 = vst.msk [vmem:[#allocation2] sm:$0xff] %vm426, %v379
        %428 = vst.msk [vmem:[#allocation2 + $0x10] sm:$0xff] %vm426, %v381
        %429 = vst.msk [vmem:[#allocation2 + $0x20] sm:$0xff] %vm426, %v383
        %430 = vst.msk [vmem:[#allocation2 + $0x30] sm:$0xff] %vm426, %v385
        %431 = vst.msk [vmem:[#allocation2 + $0x40] sm:$0xff] %vm426, %v387
        %432 = vst.msk [vmem:[#allocation2 + $0x50] sm:$0xff] %vm426, %v389
        %433 = vst.msk [vmem:[#allocation2 + $0x60] sm:$0xff] %vm426, %v391
        %434 = vst.msk [vmem:[#allocation2 + $0x70] sm:$0xff] %vm426, %v393
        %435 = vst.msk [vmem:[#allocation2 + $0x80] sm:$0xff] %vm426, %v395
        %436 = vst.msk [vmem:[#allocation2 + $0x90] sm:$0xff] %vm426, %v397
        %437 = vst.msk [vmem:[#allocation2 + $0xa0] sm:$0xff] %vm426, %v399
        %438 = vst.msk [vmem:[#allocation2 + $0xb0] sm:$0xff] %vm426, %v401
        %439 = vst.msk [vmem:[#allocation2 + $0xc0] sm:$0xff] %vm426, %v403
        %440 = vst.msk [vmem:[#allocation2 + $0xd0] sm:$0xff] %vm426, %v405
        %441 = vst.msk [vmem:[#allocation2 + $0xe0] sm:$0xff] %vm426, %v407
        %442 = vst.msk [vmem:[#allocation2 + $0xf0] sm:$0xff] %vm426, %v409
        %vm443 = vcmask 1045504
        %v444 = vrot.slane %v272, 2
        %v445 = vrot.slane %v273, 2
        %v446 = vsel %vm443, %v444, %v445
        %v447 = vrot.slane %v274, 2
        %v448 = vsel %vm443, %v445, %v447
        %v449 = vrot.slane %v275, 2
        %v450 = vrot.slane %v276, 2
        %v451 = vsel %vm443, %v449, %v450
        %v452 = vrot.slane %v277, 2
        %v453 = vsel %vm443, %v450, %v452
        %v454 = vrot.slane %v278, 2
        %v455 = vrot.slane %v279, 2
        %v456 = vsel %vm443, %v454, %v455
        %v457 = vrot.slane %v280, 2
        %v458 = vsel %vm443, %v455, %v457
        %v459 = vrot.slane %v281, 2
        %v460 = vrot.slane %v282, 2
        %v461 = vsel %vm443, %v459, %v460
        %v462 = vrot.slane %v283, 2
        %v463 = vsel %vm443, %v460, %v462
        %v464 = vrot.slane %v284, 2
        %v465 = vrot.slane %v285, 2
        %v466 = vsel %vm443, %v464, %v465
        %v467 = vrot.slane %v286, 2
        %v468 = vsel %vm443, %v465, %v467
        %v469 = vrot.slane %v287, 2
        %v470 = vrot.slane %v288, 2
        %v471 = vsel %vm443, %v469, %v470
        %v472 = vrot.slane %v289, 2
        %v473 = vsel %vm443, %v470, %v472
        %v474 = vrot.slane %v290, 2
        %v475 = vrot.slane %v291, 2
        %v476 = vsel %vm443, %v474, %v475
        %v477 = vrot.slane %v292, 2
        %v478 = vsel %vm443, %v475, %v477
        %v479 = vrot.slane %v293, 2
        %v480 = vrot.slane %v294, 2
        %v481 = vsel %vm443, %v479, %v480
        %v482 = vrot.slane %v295, 2
        %v483 = vsel %vm443, %v480, %v482
        %484 = vrot.lane.b32.xlu0 %v446, 64
        %v485 = vpop.permute.xlu0 %484
        %486 = vrot.lane.b32.xlu0 %v448, 64
        %v487 = vpop.permute.xlu0 %486
        %488 = vrot.lane.b32.xlu0 %v451, 64
        %v489 = vpop.permute.xlu0 %488
        %490 = vrot.lane.b32.xlu0 %v453, 64
        %v491 = vpop.permute.xlu0 %490
        %492 = vrot.lane.b32.xlu0 %v456, 64
        %v493 = vpop.permute.xlu0 %492
        %494 = vrot.lane.b32.xlu0 %v458, 64
        %v495 = vpop.permute.xlu0 %494
        %496 = vrot.lane.b32.xlu0 %v461, 64
        %v497 = vpop.permute.xlu0 %496
        %498 = vrot.lane.b32.xlu0 %v463, 64
        %v499 = vpop.permute.xlu0 %498
        %500 = vrot.lane.b32.xlu0 %v466, 64
        %v501 = vpop.permute.xlu0 %500
        %502 = vrot.lane.b32.xlu0 %v468, 64
        %v503 = vpop.permute.xlu0 %502
        %504 = vrot.lane.b32.xlu0 %v471, 64
        %v505 = vpop.permute.xlu0 %504
        %506 = vrot.lane.b32.xlu0 %v473, 64
        %v507 = vpop.permute.xlu0 %506
        %508 = vrot.lane.b32.xlu0 %v476, 64
        %v509 = vpop.permute.xlu0 %508
        %510 = vrot.lane.b32.xlu0 %v478, 64
        %v511 = vpop.permute.xlu0 %510
        %512 = vrot.lane.b32.xlu0 %v481, 64
        %v513 = vpop.permute.xlu0 %512
        %514 = vrot.lane.b32.xlu0 %v483, 64
        %v515 = vpop.permute.xlu0 %514
        %vm532 = vcmask 785920
        %533 = vst.msk [vmem:[#allocation2] sm:$0xff] %vm532, %v485
        %534 = vst.msk [vmem:[#allocation2 + $0x10] sm:$0xff] %vm532, %v487
        %535 = vst.msk [vmem:[#allocation2 + $0x20] sm:$0xff] %vm532, %v489
        %536 = vst.msk [vmem:[#allocation2 + $0x30] sm:$0xff] %vm532, %v491
        %537 = vst.msk [vmem:[#allocation2 + $0x40] sm:$0xff] %vm532, %v493
        %538 = vst.msk [vmem:[#allocation2 + $0x50] sm:$0xff] %vm532, %v495
        %539 = vst.msk [vmem:[#allocation2 + $0x60] sm:$0xff] %vm532, %v497
        %540 = vst.msk [vmem:[#allocation2 + $0x70] sm:$0xff] %vm532, %v499
        %541 = vst.msk [vmem:[#allocation2 + $0x80] sm:$0xff] %vm532, %v501
        %542 = vst.msk [vmem:[#allocation2 + $0x90] sm:$0xff] %vm532, %v503
        %543 = vst.msk [vmem:[#allocation2 + $0xa0] sm:$0xff] %vm532, %v505
        %544 = vst.msk [vmem:[#allocation2 + $0xb0] sm:$0xff] %vm532, %v507
        %545 = vst.msk [vmem:[#allocation2 + $0xc0] sm:$0xff] %vm532, %v509
        %546 = vst.msk [vmem:[#allocation2 + $0xd0] sm:$0xff] %vm532, %v511
        %547 = vst.msk [vmem:[#allocation2 + $0xe0] sm:$0xff] %vm532, %v513
        %548 = vst.msk [vmem:[#allocation2 + $0xf0] sm:$0xff] %vm532, %v515
        %vm549 = vcmask 1044480
        %v550 = vrot.slane %v272, 3
        %v551 = vrot.slane %v273, 3
        %v552 = vsel %vm549, %v550, %v551
        %v553 = vrot.slane %v274, 3
        %v554 = vsel %vm549, %v551, %v553
        %v555 = vrot.slane %v275, 3
        %v556 = vrot.slane %v276, 3
        %v557 = vsel %vm549, %v555, %v556
        %v558 = vrot.slane %v277, 3
        %v559 = vsel %vm549, %v556, %v558
        %v560 = vrot.slane %v278, 3
        %v561 = vrot.slane %v279, 3
        %v562 = vsel %vm549, %v560, %v561
        %v563 = vrot.slane %v280, 3
        %v564 = vsel %vm549, %v561, %v563
        %v565 = vrot.slane %v281, 3
        %v566 = vrot.slane %v282, 3
        %v567 = vsel %vm549, %v565, %v566
        %v568 = vrot.slane %v283, 3
        %v569 = vsel %vm549, %v566, %v568
        %v570 = vrot.slane %v284, 3
        %v571 = vrot.slane %v285, 3
        %v572 = vsel %vm549, %v570, %v571
        %v573 = vrot.slane %v286, 3
        %v574 = vsel %vm549, %v571, %v573
        %v575 = vrot.slane %v287, 3
        %v576 = vrot.slane %v288, 3
        %v577 = vsel %vm549, %v575, %v576
        %v578 = vrot.slane %v289, 3
        %v579 = vsel %vm549, %v576, %v578
        %v580 = vrot.slane %v290, 3
        %v581 = vrot.slane %v291, 3
        %v582 = vsel %vm549, %v580, %v581
        %v583 = vrot.slane %v292, 3
        %v584 = vsel %vm549, %v581, %v583
        %v585 = vrot.slane %v293, 3
        %v586 = vrot.slane %v294, 3
        %v587 = vsel %vm549, %v585, %v586
        %v588 = vrot.slane %v295, 3
        %v589 = vsel %vm549, %v586, %v588
        %590 = vrot.lane.b32.xlu0 %v552, 96
        %v591 = vpop.permute.xlu0 %590
        %592 = vrot.lane.b32.xlu0 %v554, 96
        %v593 = vpop.permute.xlu0 %592
        %594 = vrot.lane.b32.xlu0 %v557, 96
        %v595 = vpop.permute.xlu0 %594
        %596 = vrot.lane.b32.xlu0 %v559, 96
        %v597 = vpop.permute.xlu0 %596
        %598 = vrot.lane.b32.xlu0 %v562, 96
        %v599 = vpop.permute.xlu0 %598
        %600 = vrot.lane.b32.xlu0 %v564, 96
        %v601 = vpop.permute.xlu0 %600
        %602 = vrot.lane.b32.xlu0 %v567, 96
        %v603 = vpop.permute.xlu0 %602
        %604 = vrot.lane.b32.xlu0 %v569, 96
        %v605 = vpop.permute.xlu0 %604
        %606 = vrot.lane.b32.xlu0 %v572, 96
        %v607 = vpop.permute.xlu0 %606
        %608 = vrot.lane.b32.xlu0 %v574, 96
        %v609 = vpop.permute.xlu0 %608
        %610 = vrot.lane.b32.xlu0 %v577, 96
        %v611 = vpop.permute.xlu0 %610
        %612 = vrot.lane.b32.xlu0 %v579, 96
        %v613 = vpop.permute.xlu0 %612
        %614 = vrot.lane.b32.xlu0 %v582, 96
        %v615 = vpop.permute.xlu0 %614
        %616 = vrot.lane.b32.xlu0 %v584, 96
        %v617 = vpop.permute.xlu0 %616
        %618 = vrot.lane.b32.xlu0 %v587, 96
        %v619 = vpop.permute.xlu0 %618
        %620 = vrot.lane.b32.xlu0 %v589, 96
        %v621 = vpop.permute.xlu0 %620
        %vm638 = vcmask 1048320
        %639 = vst.msk [vmem:[#allocation2] sm:$0xff] %vm638, %v591
        %640 = vst.msk [vmem:[#allocation2 + $0x10] sm:$0xff] %vm638, %v593
        %641 = vst.msk [vmem:[#allocation2 + $0x20] sm:$0xff] %vm638, %v595
        %642 = vst.msk [vmem:[#allocation2 + $0x30] sm:$0xff] %vm638, %v597
        %643 = vst.msk [vmem:[#allocation2 + $0x40] sm:$0xff] %vm638, %v599
        %644 = vst.msk [vmem:[#allocation2 + $0x50] sm:$0xff] %vm638, %v601
        %645 = vst.msk [vmem:[#allocation2 + $0x60] sm:$0xff] %vm638, %v603
        %646 = vst.msk [vmem:[#allocation2 + $0x70] sm:$0xff] %vm638, %v605
        %647 = vst.msk [vmem:[#allocation2 + $0x80] sm:$0xff] %vm638, %v607
        %648 = vst.msk [vmem:[#allocation2 + $0x90] sm:$0xff] %vm638, %v609
        %649 = vst.msk [vmem:[#allocation2 + $0xa0] sm:$0xff] %vm638, %v611
        %650 = vst.msk [vmem:[#allocation2 + $0xb0] sm:$0xff] %vm638, %v613
        %651 = vst.msk [vmem:[#allocation2 + $0xc0] sm:$0xff] %vm638, %v615
        %652 = vst.msk [vmem:[#allocation2 + $0xd0] sm:$0xff] %vm638, %v617
        %653 = vst.msk [vmem:[#allocation2 + $0xe0] sm:$0xff] %vm638, %v619
        %654 = vst.msk [vmem:[#allocation2 + $0xf0] sm:$0xff] %vm638, %v621
        %vm655 = vcmask 1043456
        %v656 = vrot.slane %v272, 4
        %v657 = vrot.slane %v273, 4
        %v658 = vsel %vm655, %v656, %v657
        %v659 = vrot.slane %v274, 4
        %v660 = vsel %vm655, %v657, %v659
        %v661 = vrot.slane %v275, 4
        %v662 = vrot.slane %v276, 4
        %v663 = vsel %vm655, %v661, %v662
        %v664 = vrot.slane %v277, 4
        %v665 = vsel %vm655, %v662, %v664
        %v666 = vrot.slane %v278, 4
        %v667 = vrot.slane %v279, 4
        %v668 = vsel %vm655, %v666, %v667
        %v669 = vrot.slane %v280, 4
        %v670 = vsel %vm655, %v667, %v669
        %v671 = vrot.slane %v281, 4
        %v672 = vrot.slane %v282, 4
        %v673 = vsel %vm655, %v671, %v672
        %v674 = vrot.slane %v283, 4
        %v675 = vsel %vm655, %v672, %v674
        %v676 = vrot.slane %v284, 4
        %v677 = vrot.slane %v285, 4
        %v678 = vsel %vm655, %v676, %v677
        %v679 = vrot.slane %v286, 4
        %v680 = vsel %vm655, %v677, %v679
        %v681 = vrot.slane %v287, 4
        %v682 = vrot.slane %v288, 4
        %v683 = vsel %vm655, %v681, %v682
        %v684 = vrot.slane %v289, 4
        %v685 = vsel %vm655, %v682, %v684
        %v686 = vrot.slane %v290, 4
        %v687 = vrot.slane %v291, 4
        %v688 = vsel %vm655, %v686, %v687
        %v689 = vrot.slane %v292, 4
        %v690 = vsel %vm655, %v687, %v689
        %v691 = vrot.slane %v293, 4
        %v692 = vrot.slane %v294, 4
        %v693 = vsel %vm655, %v691, %v692
        %v694 = vrot.slane %v295, 4
        %v695 = vsel %vm655, %v692, %v694
        %712 = vst.msk [vmem:[#allocation2 + $0x8] sm:$0xff] %vm296, %v658
        %713 = vst.msk [vmem:[#allocation2 + $0x18] sm:$0xff] %vm296, %v660
        %714 = vst.msk [vmem:[#allocation2 + $0x28] sm:$0xff] %vm296, %v663
        %715 = vst.msk [vmem:[#allocation2 + $0x38] sm:$0xff] %vm296, %v665
        %716 = vst.msk [vmem:[#allocation2 + $0x48] sm:$0xff] %vm296, %v668
        %717 = vst.msk [vmem:[#allocation2 + $0x58] sm:$0xff] %vm296, %v670
        %718 = vst.msk [vmem:[#allocation2 + $0x68] sm:$0xff] %vm296, %v673
        %719 = vst.msk [vmem:[#allocation2 + $0x78] sm:$0xff] %vm296, %v675
        %720 = vst.msk [vmem:[#allocation2 + $0x88] sm:$0xff] %vm296, %v678
        %721 = vst.msk [vmem:[#allocation2 + $0x98] sm:$0xff] %vm296, %v680
        %722 = vst.msk [vmem:[#allocation2 + $0xa8] sm:$0xff] %vm296, %v683
        %723 = vst.msk [vmem:[#allocation2 + $0xb8] sm:$0xff] %vm296, %v685
        %724 = vst.msk [vmem:[#allocation2 + $0xc8] sm:$0xff] %vm296, %v688
        %725 = vst.msk [vmem:[#allocation2 + $0xd8] sm:$0xff] %vm296, %v690
        %726 = vst.msk [vmem:[#allocation2 + $0xe8] sm:$0xff] %vm296, %v693
        %727 = vst.msk [vmem:[#allocation2 + $0xf8] sm:$0xff] %vm296, %v695
        %vm728 = vcmask 1047808
        %729 = vst.msk [vmem:[#allocation2 + $0x8] sm:$0xff] %vm728, 0.0
        %730 = vst.msk [vmem:[#allocation2 + $0x18] sm:$0xff] %vm728, 0.0
        %731 = vst.msk [vmem:[#allocation2 + $0x28] sm:$0xff] %vm728, 0.0
        %732 = vst.msk [vmem:[#allocation2 + $0x38] sm:$0xff] %vm728, 0.0
        %733 = vst.msk [vmem:[#allocation2 + $0x48] sm:$0xff] %vm728, 0.0
        %734 = vst.msk [vmem:[#allocation2 + $0x58] sm:$0xff] %vm728, 0.0
        %735 = vst.msk [vmem:[#allocation2 + $0x68] sm:$0xff] %vm728, 0.0
        %736 = vst.msk [vmem:[#allocation2 + $0x78] sm:$0xff] %vm728, 0.0
        %737 = vst.msk [vmem:[#allocation2 + $0x88] sm:$0xff] %vm728, 0.0
        %738 = vst.msk [vmem:[#allocation2 + $0x98] sm:$0xff] %vm728, 0.0
        %739 = vst.msk [vmem:[#allocation2 + $0xa8] sm:$0xff] %vm728, 0.0
        %740 = vst.msk [vmem:[#allocation2 + $0xb8] sm:$0xff] %vm728, 0.0
        %741 = vst.msk [vmem:[#allocation2 + $0xc8] sm:$0xff] %vm728, 0.0
        %742 = vst.msk [vmem:[#allocation2 + $0xd8] sm:$0xff] %vm728, 0.0
        %743 = vst.msk [vmem:[#allocation2 + $0xe8] sm:$0xff] %vm728, 0.0
        %744 = vst.msk [vmem:[#allocation2 + $0xf8] sm:$0xff] %vm728, 0.0
        %v745 = vld [vmem:[#allocation2] sm:$0xff]
        %v746 = vld [vmem:[#allocation2 + $0x8] sm:$0xff]
        %v747 = vld [vmem:[#allocation2 + $0x10] sm:$0xff]
        %v748 = vld [vmem:[#allocation2 + $0x18] sm:$0xff]
        %v749 = vld [vmem:[#allocation2 + $0x20] sm:$0xff]
        %v750 = vld [vmem:[#allocation2 + $0x28] sm:$0xff]
        %v751 = vld [vmem:[#allocation2 + $0x30] sm:$0xff]
        %v752 = vld [vmem:[#allocation2 + $0x38] sm:$0xff]
        %v753 = vld [vmem:[#allocation2 + $0x40] sm:$0xff]
        %v754 = vld [vmem:[#allocation2 + $0x48] sm:$0xff]
        %v755 = vld [vmem:[#allocation2 + $0x50] sm:$0xff]
        %v756 = vld [vmem:[#allocation2 + $0x58] sm:$0xff]
        %v757 = vld [vmem:[#allocation2 + $0x60] sm:$0xff]
        %v758 = vld [vmem:[#allocation2 + $0x68] sm:$0xff]
        %v759 = vld [vmem:[#allocation2 + $0x70] sm:$0xff]
        %v760 = vld [vmem:[#allocation2 + $0x78] sm:$0xff]
        %v761 = vld [vmem:[#allocation2 + $0x80] sm:$0xff]
        %v762 = vld [vmem:[#allocation2 + $0x88] sm:$0xff]
        %v763 = vld [vmem:[#allocation2 + $0x90] sm:$0xff]
        %v764 = vld [vmem:[#allocation2 + $0x98] sm:$0xff]
        %v765 = vld [vmem:[#allocation2 + $0xa0] sm:$0xff]
        %v766 = vld [vmem:[#allocation2 + $0xa8] sm:$0xff]
        %v767 = vld [vmem:[#allocation2 + $0xb0] sm:$0xff]
        %v768 = vld [vmem:[#allocation2 + $0xb8] sm:$0xff]
        %v769 = vld [vmem:[#allocation2 + $0xc0] sm:$0xff]
        %v770 = vld [vmem:[#allocation2 + $0xc8] sm:$0xff]
        %v771 = vld [vmem:[#allocation2 + $0xd0] sm:$0xff]
        %v772 = vld [vmem:[#allocation2 + $0xd8] sm:$0xff]
        %v773 = vld [vmem:[#allocation2 + $0xe0] sm:$0xff]
        %v774 = vld [vmem:[#allocation2 + $0xe8] sm:$0xff]
        %v775 = vld [vmem:[#allocation2 + $0xf0] sm:$0xff]
        %v776 = vld [vmem:[#allocation2 + $0xf8] sm:$0xff]
        %v777 = vld [vmem:[#allocation3] sm:$0xff]
        %v778 = vld [vmem:[#allocation3 + $0x8] sm:$0xff]
        %v779 = vld [vmem:[#allocation3 + $0x10] sm:$0xff]
        %v780 = vld [vmem:[#allocation3 + $0x18] sm:$0xff]
        %v781 = vld [vmem:[#allocation3 + $0x20] sm:$0xff]
        %v782 = vld [vmem:[#allocation3 + $0x28] sm:$0xff]
        %v783 = vld [vmem:[#allocation3 + $0x30] sm:$0xff]
        %v784 = vld [vmem:[#allocation3 + $0x38] sm:$0xff]
        %v785 = vld [vmem:[#allocation3 + $0x40] sm:$0xff]
        %v786 = vld [vmem:[#allocation3 + $0x48] sm:$0xff]
        %v787 = vld [vmem:[#allocation3 + $0x50] sm:$0xff]
        %v788 = vld [vmem:[#allocation3 + $0x58] sm:$0xff]
        %v789 = vld [vmem:[#allocation3 + $0x60] sm:$0xff]
        %v790 = vld [vmem:[#allocation3 + $0x68] sm:$0xff]
        %v791 = vld [vmem:[#allocation3 + $0x70] sm:$0xff]
        %v792 = vld [vmem:[#allocation3 + $0x78] sm:$0xff]
        %v793 = vld [vmem:[#allocation3 + $0x80] sm:$0xff]
        %v794 = vld [vmem:[#allocation3 + $0x88] sm:$0xff]
        %v795 = vld [vmem:[#allocation3 + $0x90] sm:$0xff]
        %v796 = vld [vmem:[#allocation3 + $0x98] sm:$0xff]
        %v797 = vld [vmem:[#allocation3 + $0xa0] sm:$0xff]
        %v798 = vld [vmem:[#allocation3 + $0xa8] sm:$0xff]
        %v799 = vld [vmem:[#allocation3 + $0xb0] sm:$0xff]
        %v800 = vld [vmem:[#allocation3 + $0xb8] sm:$0xff]
        %v801 = vld [vmem:[#allocation3 + $0xc0] sm:$0xff]
        %v802 = vld [vmem:[#allocation3 + $0xc8] sm:$0xff]
        %v803 = vld [vmem:[#allocation3 + $0xd0] sm:$0xff]
        %v804 = vld [vmem:[#allocation3 + $0xd8] sm:$0xff]
        %v805 = vld [vmem:[#allocation3 + $0xe0] sm:$0xff]
        %v806 = vld [vmem:[#allocation3 + $0xe8] sm:$0xff]
        %v807 = vld [vmem:[#allocation3 + $0xf0] sm:$0xff]
        %v808 = vld [vmem:[#allocation3 + $0xf8] sm:$0xff]
        %v809 = vld [vmem:[#allocation3 + $0x100] sm:$0xff]
        %v810 = vld [vmem:[#allocation3 + $0x108] sm:$0xff]
        %v811 = vld [vmem:[#allocation3 + $0x110] sm:$0xff]
        %v812 = vld [vmem:[#allocation3 + $0x118] sm:$0xff]
        %v813 = vld [vmem:[#allocation3 + $0x120] sm:$0xff]
        %v814 = vld [vmem:[#allocation3 + $0x128] sm:$0xff]
        %v815 = vld [vmem:[#allocation3 + $0x130] sm:$0xff]
        %v816 = vld [vmem:[#allocation3 + $0x138] sm:$0xff]
        %v817 = vld [vmem:[#allocation3 + $0x140] sm:$0xff]
        %v818 = vld [vmem:[#allocation3 + $0x148] sm:$0xff]
        %v819 = vld [vmem:[#allocation3 + $0x150] sm:$0xff]
        %v820 = vld [vmem:[#allocation3 + $0x158] sm:$0xff]
        %v821 = vld [vmem:[#allocation3 + $0x160] sm:$0xff]
        %v822 = vld [vmem:[#allocation3 + $0x168] sm:$0xff]
        %v823 = vld [vmem:[#allocation3 + $0x170] sm:$0xff]
        %v824 = vld [vmem:[#allocation3 + $0x178] sm:$0xff]
        %v825 = vld [vmem:[#allocation3 + $0x180] sm:$0xff]
        %v826 = vld [vmem:[#allocation3 + $0x188] sm:$0xff]
        %v827 = vld [vmem:[#allocation3 + $0x190] sm:$0xff]
        %v828 = vld [vmem:[#allocation3 + $0x198] sm:$0xff]
        %v829 = vld [vmem:[#allocation3 + $0x1a0] sm:$0xff]
        %v830 = vld [vmem:[#allocation3 + $0x1a8] sm:$0xff]
        %v831 = vld [vmem:[#allocation3 + $0x1b0] sm:$0xff]
        %v832 = vld [vmem:[#allocation3 + $0x1b8] sm:$0xff]
        %v833 = vld [vmem:[#allocation3 + $0x1c0] sm:$0xff]
        %v834 = vld [vmem:[#allocation3 + $0x1c8] sm:$0xff]
        %v835 = vld [vmem:[#allocation3 + $0x1d0] sm:$0xff]
        %v836 = vld [vmem:[#allocation3 + $0x1d8] sm:$0xff]
        %v837 = vld [vmem:[#allocation3 + $0x1e0] sm:$0xff]
        %v838 = vld [vmem:[#allocation3 + $0x1e8] sm:$0xff]
        %v839 = vld [vmem:[#allocation3 + $0x1f0] sm:$0xff]
        %v840 = vld [vmem:[#allocation3 + $0x1f8] sm:$0xff]
        %v841 = vld [vmem:[#allocation3 + $0x200] sm:$0xff]
        %v842 = vld [vmem:[#allocation3 + $0x208] sm:$0xff]
        %v843 = vld [vmem:[#allocation3 + $0x210] sm:$0xff]
        %v844 = vld [vmem:[#allocation3 + $0x218] sm:$0xff]
        %v845 = vld [vmem:[#allocation3 + $0x220] sm:$0xff]
        %v846 = vld [vmem:[#allocation3 + $0x228] sm:$0xff]
        %v847 = vld [vmem:[#allocation3 + $0x230] sm:$0xff]
        %v848 = vld [vmem:[#allocation3 + $0x238] sm:$0xff]
        %v849 = vld [vmem:[#allocation3 + $0x240] sm:$0xff]
        %v850 = vld [vmem:[#allocation3 + $0x248] sm:$0xff]
        %v851 = vld [vmem:[#allocation3 + $0x250] sm:$0xff]
        %v852 = vld [vmem:[#allocation3 + $0x258] sm:$0xff]
        %v853 = vld [vmem:[#allocation3 + $0x260] sm:$0xff]
        %v854 = vld [vmem:[#allocation3 + $0x268] sm:$0xff]
        %v855 = vld [vmem:[#allocation3 + $0x270] sm:$0xff]
        %v856 = vld [vmem:[#allocation3 + $0x278] sm:$0xff]
        %v857 = vld [vmem:[#allocation3 + $0x280] sm:$0xff]
        %v858 = vld [vmem:[#allocation3 + $0x288] sm:$0xff]
        %v859 = vld [vmem:[#allocation3 + $0x290] sm:$0xff]
        %v860 = vld [vmem:[#allocation3 + $0x298] sm:$0xff]
        %v861 = vld [vmem:[#allocation3 + $0x2a0] sm:$0xff]
        %v862 = vld [vmem:[#allocation3 + $0x2a8] sm:$0xff]
        %v863 = vld [vmem:[#allocation3 + $0x2b0] sm:$0xff]
        %v864 = vld [vmem:[#allocation3 + $0x2b8] sm:$0xff]
        %v865 = vld [vmem:[#allocation3 + $0x2c0] sm:$0xff]
        %v866 = vld [vmem:[#allocation3 + $0x2c8] sm:$0xff]
        %v867 = vld [vmem:[#allocation3 + $0x2d0] sm:$0xff]
        %v868 = vld [vmem:[#allocation3 + $0x2d8] sm:$0xff]
        %v869 = vld [vmem:[#allocation3 + $0x2e0] sm:$0xff]
        %v870 = vld [vmem:[#allocation3 + $0x2e8] sm:$0xff]
        %v871 = vld [vmem:[#allocation3 + $0x2f0] sm:$0xff]
        %v872 = vld [vmem:[#allocation3 + $0x2f8] sm:$0xff]
        %873 = vmatpush.msra.mxu0 %v822
        %874 = vmatpush.msra.mxu0 %v819
        %875 = vmatpush.msra.mxu0 %v816
        %876 = vmatpush.msra.mxu0 %v813
        %877 = vmatpush.msra.mxu0 %v810
        %878 = vmatpush.msra.mxu0 %v807
        %879 = vmatpush.msra.mxu0 %v804
        %880 = vmatpush.msra.mxu0 %v801
        %881 = vmatpush.msra.mxu0 %v798
        %882 = vmatpush.msra.mxu0 %v795
        %883 = vmatpush.msra.mxu0 %v792
        %884 = vmatpush.msra.mxu0 %v789
        %885 = vmatpush.msra.mxu0 %v786
        %886 = vmatpush.msra.mxu0 %v783
        %887 = vmatpush.msra.mxu0 %v780
        %888 = vmatpush.msra.mxu0 %v777
        %889 = vmatmul.f32.gmra.mxu0 %v745
        %v890 = vpop.f32.mrf.mxu0
        %v891 = vadd.f32 0.0, %v890
        %892 = vmatmul.f32.gmra.mxu0 %v747
        %v893 = vpop.f32.mrf.mxu0
        %v894 = vadd.f32 0.0, %v893
        %895 = vmatmul.f32.gmra.mxu0 %v749
        %v896 = vpop.f32.mrf.mxu0
        %v897 = vadd.f32 0.0, %v896
        %898 = vmatmul.f32.gmra.mxu0 %v751
        %v899 = vpop.f32.mrf.mxu0
        %v900 = vadd.f32 0.0, %v899
        %901 = vmatmul.f32.gmra.mxu0 %v753
        %v902 = vpop.f32.mrf.mxu0
        %v903 = vadd.f32 0.0, %v902
        %904 = vmatmul.f32.gmra.mxu0 %v755
        %v905 = vpop.f32.mrf.mxu0
        %v906 = vadd.f32 0.0, %v905
        %907 = vmatmul.f32.gmra.mxu0 %v757
        %v908 = vpop.f32.mrf.mxu0
        %v909 = vadd.f32 0.0, %v908
        %910 = vmatmul.f32.gmra.mxu0 %v759
        %v911 = vpop.f32.mrf.mxu0
        %v912 = vadd.f32 0.0, %v911
        %913 = vmatmul.f32.gmra.mxu0 %v761
        %v914 = vpop.f32.mrf.mxu0
        %v915 = vadd.f32 0.0, %v914
        %916 = vmatmul.f32.gmra.mxu0 %v763
        %v917 = vpop.f32.mrf.mxu0
        %v918 = vadd.f32 0.0, %v917
        %919 = vmatmul.f32.gmra.mxu0 %v765
        %v920 = vpop.f32.mrf.mxu0
        %v921 = vadd.f32 0.0, %v920
        %922 = vmatmul.f32.gmra.mxu0 %v767
        %v923 = vpop.f32.mrf.mxu0
        %v924 = vadd.f32 0.0, %v923
        %925 = vmatmul.f32.gmra.mxu0 %v769
        %v926 = vpop.f32.mrf.mxu0
        %v927 = vadd.f32 0.0, %v926
        %928 = vmatmul.f32.gmra.mxu0 %v771
        %v929 = vpop.f32.mrf.mxu0
        %v930 = vadd.f32 0.0, %v929
        %931 = vmatmul.f32.gmra.mxu0 %v773
        %v932 = vpop.f32.mrf.mxu0
        %v933 = vadd.f32 0.0, %v932
        %934 = vmatmul.f32.gmra.mxu0 %v775
        %v935 = vpop.f32.mrf.mxu0
        %v936 = vadd.f32 0.0, %v935
        %937 = vdwg.mxu0
        %938 = vmatpush.msra.mxu0 %v870
        %939 = vmatpush.msra.mxu0 %v867
        %940 = vmatpush.msra.mxu0 %v864
        %941 = vmatpush.msra.mxu0 %v861
        %942 = vmatpush.msra.mxu0 %v858
        %943 = vmatpush.msra.mxu0 %v855
        %944 = vmatpush.msra.mxu0 %v852
        %945 = vmatpush.msra.mxu0 %v849
        %946 = vmatpush.msra.mxu0 %v846
        %947 = vmatpush.msra.mxu0 %v843
        %948 = vmatpush.msra.mxu0 %v840
        %949 = vmatpush.msra.mxu0 %v837
        %950 = vmatpush.msra.mxu0 %v834
        %951 = vmatpush.msra.mxu0 %v831
        %952 = vmatpush.msra.mxu0 %v828
        %953 = vmatpush.msra.mxu0 %v825
        %954 = vmatmul.f32.gmra.mxu0 %v746
        %v955 = vpop.f32.mrf.mxu0
        %v956 = vadd.f32 %v891, %v955
        %957 = vmatmul.f32.gmra.mxu0 %v748
        %v958 = vpop.f32.mrf.mxu0
        %v959 = vadd.f32 %v894, %v958
        %960 = vmatmul.f32.gmra.mxu0 %v750
        %v961 = vpop.f32.mrf.mxu0
        %v962 = vadd.f32 %v897, %v961
        %963 = vmatmul.f32.gmra.mxu0 %v752
        %v964 = vpop.f32.mrf.mxu0
        %v965 = vadd.f32 %v900, %v964
        %966 = vmatmul.f32.gmra.mxu0 %v754
        %v967 = vpop.f32.mrf.mxu0
        %v968 = vadd.f32 %v903, %v967
        %969 = vmatmul.f32.gmra.mxu0 %v756
        %v970 = vpop.f32.mrf.mxu0
        %v971 = vadd.f32 %v906, %v970
        %972 = vmatmul.f32.gmra.mxu0 %v758
        %v973 = vpop.f32.mrf.mxu0
        %v974 = vadd.f32 %v909, %v973
        %975 = vmatmul.f32.gmra.mxu0 %v760
        %v976 = vpop.f32.mrf.mxu0
        %v977 = vadd.f32 %v912, %v976
        %978 = vmatmul.f32.gmra.mxu0 %v762
        %v979 = vpop.f32.mrf.mxu0
        %v980 = vadd.f32 %v915, %v979
        %981 = vmatmul.f32.gmra.mxu0 %v764
        %v982 = vpop.f32.mrf.mxu0
        %v983 = vadd.f32 %v918, %v982
        %984 = vmatmul.f32.gmra.mxu0 %v766
        %v985 = vpop.f32.mrf.mxu0
        %v986 = vadd.f32 %v921, %v985
        %987 = vmatmul.f32.gmra.mxu0 %v768
        %v988 = vpop.f32.mrf.mxu0
        %v989 = vadd.f32 %v924, %v988
        %990 = vmatmul.f32.gmra.mxu0 %v770
        %v991 = vpop.f32.mrf.mxu0
        %v992 = vadd.f32 %v927, %v991
        %993 = vmatmul.f32.gmra.mxu0 %v772
        %v994 = vpop.f32.mrf.mxu0
        %v995 = vadd.f32 %v930, %v994
        %996 = vmatmul.f32.gmra.mxu0 %v774
        %v997 = vpop.f32.mrf.mxu0
        %v998 = vadd.f32 %v933, %v997
        %999 = vmatmul.f32.gmra.mxu0 %v776
        %v1000 = vpop.f32.mrf.mxu0
        %v1001 = vadd.f32 %v936, %v1000
        %1002 = vdwg.mxu0
        %1003 = vmatpush.msra.mxu0 %v823
        %1004 = vmatpush.msra.mxu0 %v820
        %1005 = vmatpush.msra.mxu0 %v817
        %1006 = vmatpush.msra.mxu0 %v814
        %1007 = vmatpush.msra.mxu0 %v811
        %1008 = vmatpush.msra.mxu0 %v808
        %1009 = vmatpush.msra.mxu0 %v805
        %1010 = vmatpush.msra.mxu0 %v802
        %1011 = vmatpush.msra.mxu0 %v799
        %1012 = vmatpush.msra.mxu0 %v796
        %1013 = vmatpush.msra.mxu0 %v793
        %1014 = vmatpush.msra.mxu0 %v790
        %1015 = vmatpush.msra.mxu0 %v787
        %1016 = vmatpush.msra.mxu0 %v784
        %1017 = vmatpush.msra.mxu0 %v781
        %1018 = vmatpush.msra.mxu0 %v778
        %1019 = vmatmul.f32.gmra.mxu0 %v745
        %v1020 = vpop.f32.mrf.mxu0
        %v1021 = vadd.f32 0.0, %v1020
        %1022 = vmatmul.f32.gmra.mxu0 %v747
        %v1023 = vpop.f32.mrf.mxu0
        %v1024 = vadd.f32 0.0, %v1023
        %1025 = vmatmul.f32.gmra.mxu0 %v749
        %v1026 = vpop.f32.mrf.mxu0
        %v1027 = vadd.f32 0.0, %v1026
        %1028 = vmatmul.f32.gmra.mxu0 %v751
        %v1029 = vpop.f32.mrf.mxu0
        %v1030 = vadd.f32 0.0, %v1029
        %1031 = vmatmul.f32.gmra.mxu0 %v753
        %v1032 = vpop.f32.mrf.mxu0
        %v1033 = vadd.f32 0.0, %v1032
        %1034 = vmatmul.f32.gmra.mxu0 %v755
        %v1035 = vpop.f32.mrf.mxu0
        %v1036 = vadd.f32 0.0, %v1035
        %1037 = vmatmul.f32.gmra.mxu0 %v757
        %v1038 = vpop.f32.mrf.mxu0
        %v1039 = vadd.f32 0.0, %v1038
        %1040 = vmatmul.f32.gmra.mxu0 %v759
        %v1041 = vpop.f32.mrf.mxu0
        %v1042 = vadd.f32 0.0, %v1041
        %1043 = vmatmul.f32.gmra.mxu0 %v761
        %v1044 = vpop.f32.mrf.mxu0
        %v1045 = vadd.f32 0.0, %v1044
        %1046 = vmatmul.f32.gmra.mxu0 %v763
        %v1047 = vpop.f32.mrf.mxu0
        %v1048 = vadd.f32 0.0, %v1047
        %1049 = vmatmul.f32.gmra.mxu0 %v765
        %v1050 = vpop.f32.mrf.mxu0
        %v1051 = vadd.f32 0.0, %v1050
        %1052 = vmatmul.f32.gmra.mxu0 %v767
        %v1053 = vpop.f32.mrf.mxu0
        %v1054 = vadd.f32 0.0, %v1053
        %1055 = vmatmul.f32.gmra.mxu0 %v769
        %v1056 = vpop.f32.mrf.mxu0
        %v1057 = vadd.f32 0.0, %v1056
        %1058 = vmatmul.f32.gmra.mxu0 %v771
        %v1059 = vpop.f32.mrf.mxu0
        %v1060 = vadd.f32 0.0, %v1059
        %1061 = vmatmul.f32.gmra.mxu0 %v773
        %v1062 = vpop.f32.mrf.mxu0
        %v1063 = vadd.f32 0.0, %v1062
        %1064 = vmatmul.f32.gmra.mxu0 %v775
        %v1065 = vpop.f32.mrf.mxu0
        %v1066 = vadd.f32 0.0, %v1065
        %1067 = vdwg.mxu0
        %1068 = vmatpush.msra.mxu0 %v871
        %1069 = vmatpush.msra.mxu0 %v868
        %1070 = vmatpush.msra.mxu0 %v865
        %1071 = vmatpush.msra.mxu0 %v862
        %1072 = vmatpush.msra.mxu0 %v859
        %1073 = vmatpush.msra.mxu0 %v856
        %1074 = vmatpush.msra.mxu0 %v853
        %1075 = vmatpush.msra.mxu0 %v850
        %1076 = vmatpush.msra.mxu0 %v847
        %1077 = vmatpush.msra.mxu0 %v844
        %1078 = vmatpush.msra.mxu0 %v841
        %1079 = vmatpush.msra.mxu0 %v838
        %1080 = vmatpush.msra.mxu0 %v835
        %1081 = vmatpush.msra.mxu0 %v832
        %1082 = vmatpush.msra.mxu0 %v829
        %1083 = vmatpush.msra.mxu0 %v826
        %1084 = vmatmul.f32.gmra.mxu0 %v746
        %v1085 = vpop.f32.mrf.mxu0
        %v1086 = vadd.f32 %v1021, %v1085
        %1087 = vmatmul.f32.gmra.mxu0 %v748
        %v1088 = vpop.f32.mrf.mxu0
        %v1089 = vadd.f32 %v1024, %v1088
        %1090 = vmatmul.f32.gmra.mxu0 %v750
        %v1091 = vpop.f32.mrf.mxu0
        %v1092 = vadd.f32 %v1027, %v1091
        %1093 = vmatmul.f32.gmra.mxu0 %v752
        %v1094 = vpop.f32.mrf.mxu0
        %v1095 = vadd.f32 %v1030, %v1094
        %1096 = vmatmul.f32.gmra.mxu0 %v754
        %v1097 = vpop.f32.mrf.mxu0
        %v1098 = vadd.f32 %v1033, %v1097
        %1099 = vmatmul.f32.gmra.mxu0 %v756
        %v1100 = vpop.f32.mrf.mxu0
        %v1101 = vadd.f32 %v1036, %v1100
        %1102 = vmatmul.f32.gmra.mxu0 %v758
        %v1103 = vpop.f32.mrf.mxu0
        %v1104 = vadd.f32 %v1039, %v1103
        %1105 = vmatmul.f32.gmra.mxu0 %v760
        %v1106 = vpop.f32.mrf.mxu0
        %v1107 = vadd.f32 %v1042, %v1106
        %1108 = vmatmul.f32.gmra.mxu0 %v762
        %v1109 = vpop.f32.mrf.mxu0
        %v1110 = vadd.f32 %v1045, %v1109
        %1111 = vmatmul.f32.gmra.mxu0 %v764
        %v1112 = vpop.f32.mrf.mxu0
        %v1113 = vadd.f32 %v1048, %v1112
        %1114 = vmatmul.f32.gmra.mxu0 %v766
        %v1115 = vpop.f32.mrf.mxu0
        %v1116 = vadd.f32 %v1051, %v1115
        %1117 = vmatmul.f32.gmra.mxu0 %v768
        %v1118 = vpop.f32.mrf.mxu0
        %v1119 = vadd.f32 %v1054, %v1118
        %1120 = vmatmul.f32.gmra.mxu0 %v770
        %v1121 = vpop.f32.mrf.mxu0
        %v1122 = vadd.f32 %v1057, %v1121
        %1123 = vmatmul.f32.gmra.mxu0 %v772
        %v1124 = vpop.f32.mrf.mxu0
        %v1125 = vadd.f32 %v1060, %v1124
        %1126 = vmatmul.f32.gmra.mxu0 %v774
        %v1127 = vpop.f32.mrf.mxu0
        %v1128 = vadd.f32 %v1063, %v1127
        %1129 = vmatmul.f32.gmra.mxu0 %v776
        %v1130 = vpop.f32.mrf.mxu0
        %v1131 = vadd.f32 %v1066, %v1130
        %1132 = vdwg.mxu0
        %1133 = vmatpush.msra.mxu0 %v824
        %1134 = vmatpush.msra.mxu0 %v821
        %1135 = vmatpush.msra.mxu0 %v818
        %1136 = vmatpush.msra.mxu0 %v815
        %1137 = vmatpush.msra.mxu0 %v812
        %1138 = vmatpush.msra.mxu0 %v809
        %1139 = vmatpush.msra.mxu0 %v806
        %1140 = vmatpush.msra.mxu0 %v803
        %1141 = vmatpush.msra.mxu0 %v800
        %1142 = vmatpush.msra.mxu0 %v797
        %1143 = vmatpush.msra.mxu0 %v794
        %1144 = vmatpush.msra.mxu0 %v791
        %1145 = vmatpush.msra.mxu0 %v788
        %1146 = vmatpush.msra.mxu0 %v785
        %1147 = vmatpush.msra.mxu0 %v782
        %1148 = vmatpush.msra.mxu0 %v779
        %1149 = vmatmul.f32.gmra.mxu0 %v745
        %v1150 = vpop.f32.mrf.mxu0
        %v1151 = vadd.f32 0.0, %v1150
        %1152 = vmatmul.f32.gmra.mxu0 %v747
        %v1153 = vpop.f32.mrf.mxu0
        %v1154 = vadd.f32 0.0, %v1153
        %1155 = vmatmul.f32.gmra.mxu0 %v749
        %v1156 = vpop.f32.mrf.mxu0
        %v1157 = vadd.f32 0.0, %v1156
        %1158 = vmatmul.f32.gmra.mxu0 %v751
        %v1159 = vpop.f32.mrf.mxu0
        %v1160 = vadd.f32 0.0, %v1159
        %1161 = vmatmul.f32.gmra.mxu0 %v753
        %v1162 = vpop.f32.mrf.mxu0
        %v1163 = vadd.f32 0.0, %v1162
        %1164 = vmatmul.f32.gmra.mxu0 %v755
        %v1165 = vpop.f32.mrf.mxu0
        %v1166 = vadd.f32 0.0, %v1165
        %1167 = vmatmul.f32.gmra.mxu0 %v757
        %v1168 = vpop.f32.mrf.mxu0
        %v1169 = vadd.f32 0.0, %v1168
        %1170 = vmatmul.f32.gmra.mxu0 %v759
        %v1171 = vpop.f32.mrf.mxu0
        %v1172 = vadd.f32 0.0, %v1171
        %1173 = vmatmul.f32.gmra.mxu0 %v761
        %v1174 = vpop.f32.mrf.mxu0
        %v1175 = vadd.f32 0.0, %v1174
        %1176 = vmatmul.f32.gmra.mxu0 %v763
        %v1177 = vpop.f32.mrf.mxu0
        %v1178 = vadd.f32 0.0, %v1177
        %1179 = vmatmul.f32.gmra.mxu0 %v765
        %v1180 = vpop.f32.mrf.mxu0
        %v1181 = vadd.f32 0.0, %v1180
        %1182 = vmatmul.f32.gmra.mxu0 %v767
        %v1183 = vpop.f32.mrf.mxu0
        %v1184 = vadd.f32 0.0, %v1183
        %1185 = vmatmul.f32.gmra.mxu0 %v769
        %v1186 = vpop.f32.mrf.mxu0
        %v1187 = vadd.f32 0.0, %v1186
        %1188 = vmatmul.f32.gmra.mxu0 %v771
        %v1189 = vpop.f32.mrf.mxu0
        %v1190 = vadd.f32 0.0, %v1189
        %1191 = vmatmul.f32.gmra.mxu0 %v773
        %v1192 = vpop.f32.mrf.mxu0
        %v1193 = vadd.f32 0.0, %v1192
        %1194 = vmatmul.f32.gmra.mxu0 %v775
        %v1195 = vpop.f32.mrf.mxu0
        %v1196 = vadd.f32 0.0, %v1195
        %1197 = vdwg.mxu0
        %1198 = vmatpush.msra.mxu0 %v872
        %1199 = vmatpush.msra.mxu0 %v869
        %1200 = vmatpush.msra.mxu0 %v866
        %1201 = vmatpush.msra.mxu0 %v863
        %1202 = vmatpush.msra.mxu0 %v860
        %1203 = vmatpush.msra.mxu0 %v857
        %1204 = vmatpush.msra.mxu0 %v854
        %1205 = vmatpush.msra.mxu0 %v851
        %1206 = vmatpush.msra.mxu0 %v848
        %1207 = vmatpush.msra.mxu0 %v845
        %1208 = vmatpush.msra.mxu0 %v842
        %1209 = vmatpush.msra.mxu0 %v839
        %1210 = vmatpush.msra.mxu0 %v836
        %1211 = vmatpush.msra.mxu0 %v833
        %1212 = vmatpush.msra.mxu0 %v830
        %1213 = vmatpush.msra.mxu0 %v827
        %1214 = vmatmul.f32.gmra.mxu0 %v746
        %v1215 = vpop.f32.mrf.mxu0
        %v1216 = vadd.f32 %v1151, %v1215
        %1217 = vmatmul.f32.gmra.mxu0 %v748
        %v1218 = vpop.f32.mrf.mxu0
        %v1219 = vadd.f32 %v1154, %v1218
        %1220 = vmatmul.f32.gmra.mxu0 %v750
        %v1221 = vpop.f32.mrf.mxu0
        %v1222 = vadd.f32 %v1157, %v1221
        %1223 = vmatmul.f32.gmra.mxu0 %v752
        %v1224 = vpop.f32.mrf.mxu0
        %v1225 = vadd.f32 %v1160, %v1224
        %1226 = vmatmul.f32.gmra.mxu0 %v754
        %v1227 = vpop.f32.mrf.mxu0
        %v1228 = vadd.f32 %v1163, %v1227
        %1229 = vmatmul.f32.gmra.mxu0 %v756
        %v1230 = vpop.f32.mrf.mxu0
        %v1231 = vadd.f32 %v1166, %v1230
        %1232 = vmatmul.f32.gmra.mxu0 %v758
        %v1233 = vpop.f32.mrf.mxu0
        %v1234 = vadd.f32 %v1169, %v1233
        %1235 = vmatmul.f32.gmra.mxu0 %v760
        %v1236 = vpop.f32.mrf.mxu0
        %v1237 = vadd.f32 %v1172, %v1236
        %1238 = vmatmul.f32.gmra.mxu0 %v762
        %v1239 = vpop.f32.mrf.mxu0
        %v1240 = vadd.f32 %v1175, %v1239
        %1241 = vmatmul.f32.gmra.mxu0 %v764
        %v1242 = vpop.f32.mrf.mxu0
        %v1243 = vadd.f32 %v1178, %v1242
        %1244 = vmatmul.f32.gmra.mxu0 %v766
        %v1245 = vpop.f32.mrf.mxu0
        %v1246 = vadd.f32 %v1181, %v1245
        %1247 = vmatmul.f32.gmra.mxu0 %v768
        %v1248 = vpop.f32.mrf.mxu0
        %v1249 = vadd.f32 %v1184, %v1248
        %1250 = vmatmul.f32.gmra.mxu0 %v770
        %v1251 = vpop.f32.mrf.mxu0
        %v1252 = vadd.f32 %v1187, %v1251
        %1253 = vmatmul.f32.gmra.mxu0 %v772
        %v1254 = vpop.f32.mrf.mxu0
        %v1255 = vadd.f32 %v1190, %v1254
        %1256 = vmatmul.f32.gmra.mxu0 %v774
        %v1257 = vpop.f32.mrf.mxu0
        %v1258 = vadd.f32 %v1193, %v1257
        %1259 = vmatmul.f32.gmra.mxu0 %v776
        %v1260 = vpop.f32.mrf.mxu0
        %v1261 = vadd.f32 %v1196, %v1260
        %1262 = vdwg.mxu0
        %v1263 = vld [vmem:[%s2] sm:$0xff]
        %v1264 = vld [vmem:[%s2 + $0x8] sm:$0xff]
        %v1265 = vld [vmem:[%s2 + $0x10] sm:$0xff]
        %v1266 = vld [vmem:[%s2 + $0x18] sm:$0xff]
        %v1267 = vld [vmem:[%s2 + $0x20] sm:$0xff]
        %v1268 = vld [vmem:[%s2 + $0x28] sm:$0xff]
        %v1269 = vadd.f32 %v956, %v1263
        %v1270 = vadd.f32 %v1086, %v1264
        %v1271 = vadd.f32 %v1216, %v1265
        %v1272 = vadd.f32 %v959, %v1266
        %v1273 = vadd.f32 %v1089, %v1267
        %v1274 = vadd.f32 %v1219, %v1268
        %v1275 = vadd.f32 %v962, %v1263
        %v1276 = vadd.f32 %v1092, %v1264
        %v1277 = vadd.f32 %v1222, %v1265
        %v1278 = vadd.f32 %v965, %v1266
        %v1279 = vadd.f32 %v1095, %v1267
        %v1280 = vadd.f32 %v1225, %v1268
        %v1281 = vadd.f32 %v968, %v1263
        %v1282 = vadd.f32 %v1098, %v1264
        %v1283 = vadd.f32 %v1228, %v1265
        %v1284 = vadd.f32 %v971, %v1266
        %v1285 = vadd.f32 %v1101, %v1267
        %v1286 = vadd.f32 %v1231, %v1268
        %v1287 = vadd.f32 %v974, %v1263
        %v1288 = vadd.f32 %v1104, %v1264
        %v1289 = vadd.f32 %v1234, %v1265
        %v1290 = vadd.f32 %v977, %v1266
        %v1291 = vadd.f32 %v1107, %v1267
        %v1292 = vadd.f32 %v1237, %v1268
        %v1293 = vadd.f32 %v980, %v1263
        %v1294 = vadd.f32 %v1110, %v1264
        %v1295 = vadd.f32 %v1240, %v1265
        %v1296 = vadd.f32 %v983, %v1266
        %v1297 = vadd.f32 %v1113, %v1267
        %v1298 = vadd.f32 %v1243, %v1268
        %v1299 = vadd.f32 %v986, %v1263
        %v1300 = vadd.f32 %v1116, %v1264
        %v1301 = vadd.f32 %v1246, %v1265
        %v1302 = vadd.f32 %v989, %v1266
        %v1303 = vadd.f32 %v1119, %v1267
        %v1304 = vadd.f32 %v1249, %v1268
        %v1305 = vadd.f32 %v992, %v1263
        %v1306 = vadd.f32 %v1122, %v1264
        %v1307 = vadd.f32 %v1252, %v1265
        %v1308 = vadd.f32 %v995, %v1266
        %v1309 = vadd.f32 %v1125, %v1267
        %v1310 = vadd.f32 %v1255, %v1268
        %v1311 = vadd.f32 %v998, %v1263
        %v1312 = vadd.f32 %v1128, %v1264
        %v1313 = vadd.f32 %v1258, %v1265
        %v1314 = vadd.f32 %v1001, %v1266
        %v1315 = vadd.f32 %v1131, %v1267
        %v1316 = vadd.f32 %v1261, %v1268
        %v1317 = vmax.f32 %v1269, %v1272
        %v1318 = vrot.slane %v1317, 4
        %v1319 = vmax.f32 %v1317, %v1318
        %v1320 = vrot.slane %v1319, 2
        %v1321 = vmax.f32 %v1319, %v1320
        %v1322 = vrot.slane %v1321, 1
        %v1323 = vmax.f32 %v1321, %v1322
        %v1324 = vmax.f32 %v1270, %v1273
        %v1325 = vrot.slane %v1324, 4
        %v1326 = vmax.f32 %v1324, %v1325
        %v1327 = vrot.slane %v1326, 2
        %v1328 = vmax.f32 %v1326, %v1327
        %v1329 = vrot.slane %v1328, 1
        %v1330 = vmax.f32 %v1328, %v1329
        %v1331 = vmax.f32 %v1271, %v1274
        %v1332 = vrot.slane %v1331, 4
        %v1333 = vmax.f32 %v1331, %v1332
        %v1334 = vrot.slane %v1333, 2
        %v1335 = vmax.f32 %v1333, %v1334
        %v1336 = vrot.slane %v1335, 1
        %v1337 = vmax.f32 %v1335, %v1336
        %v1338 = vmax.f32 %v1275, %v1278
        %v1339 = vrot.slane %v1338, 4
        %v1340 = vmax.f32 %v1338, %v1339
        %v1341 = vrot.slane %v1340, 2
        %v1342 = vmax.f32 %v1340, %v1341
        %v1343 = vrot.slane %v1342, 1
        %v1344 = vmax.f32 %v1342, %v1343
        %v1345 = vmax.f32 %v1276, %v1279
        %v1346 = vrot.slane %v1345, 4
        %v1347 = vmax.f32 %v1345, %v1346
        %v1348 = vrot.slane %v1347, 2
        %v1349 = vmax.f32 %v1347, %v1348
        %v1350 = vrot.slane %v1349, 1
        %v1351 = vmax.f32 %v1349, %v1350
        %v1352 = vmax.f32 %v1277, %v1280
        %v1353 = vrot.slane %v1352, 4
        %v1354 = vmax.f32 %v1352, %v1353
        %v1355 = vrot.slane %v1354, 2
        %v1356 = vmax.f32 %v1354, %v1355
        %v1357 = vrot.slane %v1356, 1
        %v1358 = vmax.f32 %v1356, %v1357
        %v1359 = vmax.f32 %v1281, %v1284
        %v1360 = vrot.slane %v1359, 4
        %v1361 = vmax.f32 %v1359, %v1360
        %v1362 = vrot.slane %v1361, 2
        %v1363 = vmax.f32 %v1361, %v1362
        %v1364 = vrot.slane %v1363, 1
        %v1365 = vmax.f32 %v1363, %v1364
        %v1366 = vmax.f32 %v1282, %v1285
        %v1367 = vrot.slane %v1366, 4
        %v1368 = vmax.f32 %v1366, %v1367
        %v1369 = vrot.slane %v1368, 2
        %v1370 = vmax.f32 %v1368, %v1369
        %v1371 = vrot.slane %v1370, 1
        %v1372 = vmax.f32 %v1370, %v1371
        %v1373 = vmax.f32 %v1283, %v1286
        %v1374 = vrot.slane %v1373, 4
        %v1375 = vmax.f32 %v1373, %v1374
        %v1376 = vrot.slane %v1375, 2
        %v1377 = vmax.f32 %v1375, %v1376
        %v1378 = vrot.slane %v1377, 1
        %v1379 = vmax.f32 %v1377, %v1378
        %v1380 = vmax.f32 %v1287, %v1290
        %v1381 = vrot.slane %v1380, 4
        %v1382 = vmax.f32 %v1380, %v1381
        %v1383 = vrot.slane %v1382, 2
        %v1384 = vmax.f32 %v1382, %v1383
        %v1385 = vrot.slane %v1384, 1
        %v1386 = vmax.f32 %v1384, %v1385
        %v1387 = vmax.f32 %v1288, %v1291
        %v1388 = vrot.slane %v1387, 4
        %v1389 = vmax.f32 %v1387, %v1388
        %v1390 = vrot.slane %v1389, 2
        %v1391 = vmax.f32 %v1389, %v1390
        %v1392 = vrot.slane %v1391, 1
        %v1393 = vmax.f32 %v1391, %v1392
        %v1394 = vmax.f32 %v1289, %v1292
        %v1395 = vrot.slane %v1394, 4
        %v1396 = vmax.f32 %v1394, %v1395
        %v1397 = vrot.slane %v1396, 2
        %v1398 = vmax.f32 %v1396, %v1397
        %v1399 = vrot.slane %v1398, 1
        %v1400 = vmax.f32 %v1398, %v1399
        %v1401 = vmax.f32 %v1293, %v1296
        %v1402 = vrot.slane %v1401, 4
        %v1403 = vmax.f32 %v1401, %v1402
        %v1404 = vrot.slane %v1403, 2
        %v1405 = vmax.f32 %v1403, %v1404
        %v1406 = vrot.slane %v1405, 1
        %v1407 = vmax.f32 %v1405, %v1406
        %v1408 = vmax.f32 %v1294, %v1297
        %v1409 = vrot.slane %v1408, 4
        %v1410 = vmax.f32 %v1408, %v1409
        %v1411 = vrot.slane %v1410, 2
        %v1412 = vmax.f32 %v1410, %v1411
        %v1413 = vrot.slane %v1412, 1
        %v1414 = vmax.f32 %v1412, %v1413
        %v1415 = vmax.f32 %v1295, %v1298
        %v1416 = vrot.slane %v1415, 4
        %v1417 = vmax.f32 %v1415, %v1416
        %v1418 = vrot.slane %v1417, 2
        %v1419 = vmax.f32 %v1417, %v1418
        %v1420 = vrot.slane %v1419, 1
        %v1421 = vmax.f32 %v1419, %v1420
        %v1422 = vmax.f32 %v1299, %v1302
        %v1423 = vrot.slane %v1422, 4
        %v1424 = vmax.f32 %v1422, %v1423
        %v1425 = vrot.slane %v1424, 2
        %v1426 = vmax.f32 %v1424, %v1425
        %v1427 = vrot.slane %v1426, 1
        %v1428 = vmax.f32 %v1426, %v1427
        %v1429 = vmax.f32 %v1300, %v1303
        %v1430 = vrot.slane %v1429, 4
        %v1431 = vmax.f32 %v1429, %v1430
        %v1432 = vrot.slane %v1431, 2
        %v1433 = vmax.f32 %v1431, %v1432
        %v1434 = vrot.slane %v1433, 1
        %v1435 = vmax.f32 %v1433, %v1434
        %v1436 = vmax.f32 %v1301, %v1304
        %v1437 = vrot.slane %v1436, 4
        %v1438 = vmax.f32 %v1436, %v1437
        %v1439 = vrot.slane %v1438, 2
        %v1440 = vmax.f32 %v1438, %v1439
        %v1441 = vrot.slane %v1440, 1
        %v1442 = vmax.f32 %v1440, %v1441
        %v1443 = vmax.f32 %v1305, %v1308
        %v1444 = vrot.slane %v1443, 4
        %v1445 = vmax.f32 %v1443, %v1444
        %v1446 = vrot.slane %v1445, 2
        %v1447 = vmax.f32 %v1445, %v1446
        %v1448 = vrot.slane %v1447, 1
        %v1449 = vmax.f32 %v1447, %v1448
        %v1450 = vmax.f32 %v1306, %v1309
        %v1451 = vrot.slane %v1450, 4
        %v1452 = vmax.f32 %v1450, %v1451
        %v1453 = vrot.slane %v1452, 2
        %v1454 = vmax.f32 %v1452, %v1453
        %v1455 = vrot.slane %v1454, 1
        %v1456 = vmax.f32 %v1454, %v1455
        %v1457 = vmax.f32 %v1307, %v1310
        %v1458 = vrot.slane %v1457, 4
        %v1459 = vmax.f32 %v1457, %v1458
        %v1460 = vrot.slane %v1459, 2
        %v1461 = vmax.f32 %v1459, %v1460
        %v1462 = vrot.slane %v1461, 1
        %v1463 = vmax.f32 %v1461, %v1462
        %v1464 = vmax.f32 %v1311, %v1314
        %v1465 = vrot.slane %v1464, 4
        %v1466 = vmax.f32 %v1464, %v1465
        %v1467 = vrot.slane %v1466, 2
        %v1468 = vmax.f32 %v1466, %v1467
        %v1469 = vrot.slane %v1468, 1
        %v1470 = vmax.f32 %v1468, %v1469
        %v1471 = vmax.f32 %v1312, %v1315
        %v1472 = vrot.slane %v1471, 4
        %v1473 = vmax.f32 %v1471, %v1472
        %v1474 = vrot.slane %v1473, 2
        %v1475 = vmax.f32 %v1473, %v1474
        %v1476 = vrot.slane %v1475, 1
        %v1477 = vmax.f32 %v1475, %v1476
        %v1478 = vmax.f32 %v1313, %v1316
        %v1479 = vrot.slane %v1478, 4
        %v1480 = vmax.f32 %v1478, %v1479
        %v1481 = vrot.slane %v1480, 2
        %v1482 = vmax.f32 %v1480, %v1481
        %v1483 = vrot.slane %v1482, 1
        %v1484 = vmax.f32 %v1482, %v1483
        %v1485 = vld [vmem:[%s3] sm:$0x7]
        %v1487 = vperm.slane %v1485, 0
        %v1488 = vperm.slane %v1485, 1
        %v1489 = vperm.slane %v1485, 2
        %v1493 = vadd.f32 %v1323, %v1487
        %v1494 = vadd.f32 %v1330, %v1488
        %v1495 = vadd.f32 %v1337, %v1489
        %v1496 = vadd.f32 %v1344, %v1487
        %v1497 = vadd.f32 %v1351, %v1488
        %v1498 = vadd.f32 %v1358, %v1489
        %v1499 = vadd.f32 %v1365, %v1487
        %v1500 = vadd.f32 %v1372, %v1488
        %v1501 = vadd.f32 %v1379, %v1489
        %v1502 = vadd.f32 %v1386, %v1487
        %v1503 = vadd.f32 %v1393, %v1488
        %v1504 = vadd.f32 %v1400, %v1489
        %v1505 = vadd.f32 %v1407, %v1487
        %v1506 = vadd.f32 %v1414, %v1488
        %v1507 = vadd.f32 %v1421, %v1489
        %v1508 = vadd.f32 %v1428, %v1487
        %v1509 = vadd.f32 %v1435, %v1488
        %v1510 = vadd.f32 %v1442, %v1489
        %v1511 = vadd.f32 %v1449, %v1487
        %v1512 = vadd.f32 %v1456, %v1488
        %v1513 = vadd.f32 %v1463, %v1489
        %v1514 = vadd.f32 %v1470, %v1487
        %v1515 = vadd.f32 %v1477, %v1488
        %v1516 = vadd.f32 %v1484, %v1489
        %v1517 = vmax.f32 %v1493, 0.0
        %v1518 = vmax.f32 %v1494, 0.0
        %v1519 = vmax.f32 %v1495, 0.0
        %v1520 = vmax.f32 %v1496, 0.0
        %v1521 = vmax.f32 %v1497, 0.0
        %v1522 = vmax.f32 %v1498, 0.0
        %v1523 = vmax.f32 %v1499, 0.0
        %v1524 = vmax.f32 %v1500, 0.0
        %v1525 = vmax.f32 %v1501, 0.0
        %v1526 = vmax.f32 %v1502, 0.0
        %v1527 = vmax.f32 %v1503, 0.0
        %v1528 = vmax.f32 %v1504, 0.0
        %v1529 = vmax.f32 %v1505, 0.0
        %v1530 = vmax.f32 %v1506, 0.0
        %v1531 = vmax.f32 %v1507, 0.0
        %v1532 = vmax.f32 %v1508, 0.0
        %v1533 = vmax.f32 %v1509, 0.0
        %v1534 = vmax.f32 %v1510, 0.0
        %v1535 = vmax.f32 %v1511, 0.0
        %v1536 = vmax.f32 %v1512, 0.0
        %v1537 = vmax.f32 %v1513, 0.0
        %v1538 = vmax.f32 %v1514, 0.0
        %v1539 = vmax.f32 %v1515, 0.0
        %v1540 = vmax.f32 %v1516, 0.0
        %v1541 = vld [vmem:[%s4] sm:$0xff]
        %v1542 = vld [vmem:[%s4 + $0x8] sm:$0xff]
        %v1543 = vld [vmem:[%s4 + $0x10] sm:$0xff]
        %v1544 = vld [vmem:[%s4 + $0x18] sm:$0xff]
        %v1545 = vld [vmem:[%s4 + $0x20] sm:$0xff]
        %v1546 = vld [vmem:[%s4 + $0x28] sm:$0xff]
        %v1547 = vld [vmem:[%s4 + $0x30] sm:$0xff]
        %v1548 = vld [vmem:[%s4 + $0x38] sm:$0xff]
        %v1549 = vld [vmem:[%s4 + $0x40] sm:$0xff]
        %v1550 = vld [vmem:[%s4 + $0x48] sm:$0xff]
        %v1551 = vld [vmem:[%s4 + $0x50] sm:$0xff]
        %v1552 = vld [vmem:[%s4 + $0x58] sm:$0xff]
        %v1553 = vld [vmem:[%s4 + $0x60] sm:$0xff]
        %v1554 = vld [vmem:[%s4 + $0x68] sm:$0xff]
        %v1555 = vld [vmem:[%s4 + $0x70] sm:$0xff]
        %v1556 = vld [vmem:[%s4 + $0x78] sm:$0xff]
        %v1557 = vld [vmem:[%s4 + $0x80] sm:$0xff]
        %v1558 = vld [vmem:[%s4 + $0x88] sm:$0xff]
        %v1559 = vld [vmem:[%s4 + $0x90] sm:$0xff]
        %v1560 = vld [vmem:[%s4 + $0x98] sm:$0xff]
        %v1561 = vld [vmem:[%s4 + $0xa0] sm:$0xff]
        %v1562 = vld [vmem:[%s4 + $0xa8] sm:$0xff]
        %v1563 = vld [vmem:[%s4 + $0xb0] sm:$0xff]
        %v1564 = vld [vmem:[%s4 + $0xb8] sm:$0xff]
        %v1565 = vld [vmem:[%s4 + $0xc0] sm:$0xff]
        %v1566 = vld [vmem:[%s4 + $0xc8] sm:$0xff]
        %v1567 = vld [vmem:[%s4 + $0xd0] sm:$0xff]
        %v1568 = vld [vmem:[%s4 + $0xd8] sm:$0xff]
        %v1569 = vld [vmem:[%s4 + $0xe0] sm:$0xff]
        %v1570 = vld [vmem:[%s4 + $0xe8] sm:$0xff]
        %v1571 = vld [vmem:[%s4 + $0xf0] sm:$0xff]
        %v1572 = vld [vmem:[%s4 + $0xf8] sm:$0xff]
        %v1573 = vld [vmem:[%s4 + $0x100] sm:$0xff]
        %v1574 = vld [vmem:[%s4 + $0x108] sm:$0xff]
        %v1575 = vld [vmem:[%s4 + $0x110] sm:$0xff]
        %v1576 = vld [vmem:[%s4 + $0x118] sm:$0xff]
        %v1577 = vld [vmem:[%s4 + $0x120] sm:$0xff]
        %v1578 = vld [vmem:[%s4 + $0x128] sm:$0xff]
        %v1579 = vld [vmem:[%s4 + $0x130] sm:$0xff]
        %v1580 = vld [vmem:[%s4 + $0x138] sm:$0xff]
        %v1581 = vld [vmem:[%s4 + $0x140] sm:$0xff]
        %v1582 = vld [vmem:[%s4 + $0x148] sm:$0xff]
        %v1583 = vld [vmem:[%s4 + $0x150] sm:$0xff]
        %v1584 = vld [vmem:[%s4 + $0x158] sm:$0xff]
        %v1585 = vld [vmem:[%s4 + $0x160] sm:$0xff]
        %v1586 = vld [vmem:[%s4 + $0x168] sm:$0xff]
        %v1587 = vld [vmem:[%s4 + $0x170] sm:$0xff]
        %v1588 = vld [vmem:[%s4 + $0x178] sm:$0xff]
        %v1589 = vld [vmem:[%s5] sm:$0x1]
        %v1591 = vperm.slane %v1589, 0
        %v1617 = vrot.slane %v1520, 7
        %vm1618 = vcmask 1041409
        %v1619 = vsel %vm1618, %v1617, %v1517
        %v1620 = vrot.slane %v1523, 6
        %vm1621 = vcmask 1042434
        %v1622 = vsel %vm1621, %v1620, %v1619
        %v1623 = vrot.slane %v1526, 5
        %vm1624 = vcmask 1043459
        %v1625 = vsel %vm1624, %v1623, %v1622
        %v1626 = vrot.slane %v1529, 4
        %vm1627 = vcmask 1044484
        %v1628 = vsel %vm1627, %v1626, %v1625
        %v1629 = vrot.slane %v1532, 3
        %vm1630 = vcmask 1045509
        %v1631 = vsel %vm1630, %v1629, %v1628
        %v1632 = vrot.slane %v1535, 2
        %vm1633 = vcmask 1046534
        %v1634 = vsel %vm1633, %v1632, %v1631
        %v1635 = vrot.slane %v1538, 1
        %vm1636 = vcmask 1047559
        %v1637 = vsel %vm1636, %v1635, %v1634
        %v1638 = vrot.slane %v1521, 7
        %v1639 = vsel %vm1618, %v1638, %v1518
        %v1640 = vrot.slane %v1524, 6
        %v1641 = vsel %vm1621, %v1640, %v1639
        %v1642 = vrot.slane %v1527, 5
        %v1643 = vsel %vm1624, %v1642, %v1641
        %v1644 = vrot.slane %v1530, 4
        %v1645 = vsel %vm1627, %v1644, %v1643
        %v1646 = vrot.slane %v1533, 3
        %v1647 = vsel %vm1630, %v1646, %v1645
        %v1648 = vrot.slane %v1536, 2
        %v1649 = vsel %vm1633, %v1648, %v1647
        %v1650 = vrot.slane %v1539, 1
        %v1651 = vsel %vm1636, %v1650, %v1649
        %v1652 = vrot.slane %v1522, 7
        %v1653 = vsel %vm1618, %v1652, %v1519
        %v1654 = vrot.slane %v1525, 6
        %v1655 = vsel %vm1621, %v1654, %v1653
        %v1656 = vrot.slane %v1528, 5
        %v1657 = vsel %vm1624, %v1656, %v1655
        %v1658 = vrot.slane %v1531, 4
        %v1659 = vsel %vm1627, %v1658, %v1657
        %v1660 = vrot.slane %v1534, 3
        %v1661 = vsel %vm1630, %v1660, %v1659
        %v1662 = vrot.slane %v1537, 2
        %v1663 = vsel %vm1633, %v1662, %v1661
        %v1664 = vrot.slane %v1540, 1
        %v1665 = vsel %vm1636, %v1664, %v1663
        %1669 = vmatpush.msra.mxu0 %v1556
        %1670 = vmatpush.msra.mxu0 %v1555
        %1671 = vmatpush.msra.mxu0 %v1554
        %1672 = vmatpush.msra.mxu0 %v1553
        %1673 = vmatpush.msra.mxu0 %v1552
        %1674 = vmatpush.msra.mxu0 %v1551
        %1675 = vmatpush.msra.mxu0 %v1550
        %1676 = vmatpush.msra.mxu0 %v1549
        %1677 = vmatpush.msra.mxu0 %v1548
        %1678 = vmatpush.msra.mxu0 %v1547
        %1679 = vmatpush.msra.mxu0 %v1546
        %1680 = vmatpush.msra.mxu0 %v1545
        %1681 = vmatpush.msra.mxu0 %v1544
        %1682 = vmatpush.msra.mxu0 %v1543
        %1683 = vmatpush.msra.mxu0 %v1542
        %1684 = vmatpush.msra.mxu0 %v1541
        %1685 = vmatmul.f32.gmra.mxu0 %v1637
        %v1686 = vpop.f32.mrf.mxu0
        %v1687 = vadd.f32 %v1591, %v1686
        %1688 = vdwg.mxu0
        %1689 = vmatpush.msra.mxu0 %v1572
        %1690 = vmatpush.msra.mxu0 %v1571
        %1691 = vmatpush.msra.mxu0 %v1570
        %1692 = vmatpush.msra.mxu0 %v1569
        %1693 = vmatpush.msra.mxu0 %v1568
        %1694 = vmatpush.msra.mxu0 %v1567
        %1695 = vmatpush.msra.mxu0 %v1566
        %1696 = vmatpush.msra.mxu0 %v1565
        %1697 = vmatpush.msra.mxu0 %v1564
        %1698 = vmatpush.msra.mxu0 %v1563
        %1699 = vmatpush.msra.mxu0 %v1562
        %1700 = vmatpush.msra.mxu0 %v1561
        %1701 = vmatpush.msra.mxu0 %v1560
        %1702 = vmatpush.msra.mxu0 %v1559
        %1703 = vmatpush.msra.mxu0 %v1558
        %1704 = vmatpush.msra.mxu0 %v1557
        %1705 = vmatmul.f32.gmra.mxu0 %v1651
        %v1706 = vpop.f32.mrf.mxu0
        %v1707 = vadd.f32 %v1687, %v1706
        %1708 = vdwg.mxu0
        %1709 = vmatpush.msra.mxu0 %v1588
        %1710 = vmatpush.msra.mxu0 %v1587
        %1711 = vmatpush.msra.mxu0 %v1586
        %1712 = vmatpush.msra.mxu0 %v1585
        %1713 = vmatpush.msra.mxu0 %v1584
        %1714 = vmatpush.msra.mxu0 %v1583
        %1715 = vmatpush.msra.mxu0 %v1582
        %1716 = vmatpush.msra.mxu0 %v1581
        %1717 = vmatpush.msra.mxu0 %v1580
        %1718 = vmatpush.msra.mxu0 %v1579
        %1719 = vmatpush.msra.mxu0 %v1578
        %1720 = vmatpush.msra.mxu0 %v1577
        %1721 = vmatpush.msra.mxu0 %v1576
        %1722 = vmatpush.msra.mxu0 %v1575
        %1723 = vmatpush.msra.mxu0 %v1574
        %1724 = vmatpush.msra.mxu0 %v1573
        %1725 = vmatmul.f32.gmra.mxu0 %v1665
        %v1726 = vpop.f32.mrf.mxu0
        %v1727 = vadd.f32 %v1707, %v1726
        %1728 = vdwg.mxu0
        %1729 = vst [vmem:[%s264] sm:$0xff] %v1727
        %s1730 = sand.u32 %s160, 1
        %s1731 = scalar_lea.sflag [#allocation5], %s1730
        %s1732 = sand.u32 %s160, 1
        %s1733 = smul.addr %s1732, 8
        %s1734 = scalar_lea.vmem [#allocation6], %s1733
        // Predicated region
        $region49: #{tpu_custom_call.1} parent=43 // pred_check
          %p1735 = pneg %p170
        $region50: #{tpu_custom_call.1} parent=43 // pred_check_branch
          %1737 = sbr.rel (%p1735) target = $region52
        $region51: #{tpu_custom_call.1} parent=43 // pred_region
          %1739 = vsyncadd %s1731, 0
          %s1740 = smul.addr %s21, 8
          %s1741 = scalar_lea.hbm %s6, %s1740
          %s1743 = sshll.u32 %s1734, 4
          %s1744 = int_to_ptr.vmem [resolvable:$true] %s1743
          %s1745 = sshll.u32 %s1741, 4
          %s1746 = int_to_ptr.hbm [resolvable:$true] %s1745
          %1748 = dma.vmem_to_hbm [thread:$0]  %s1744, 128, %s1746, %s1731
        $region52: #{tpu_custom_call.1} parent=43 // pred_fallthru
          _
      $region44: #{tpu_custom_call.1} parent=5 // pred_fallthru
        _
      %p1749 = scmp.le.s32.totalorder 2, %s16
      // Predicated region
      $region53: #{tpu_custom_call.1} parent=5 // pred_check
        %p1750 = pneg %p1749
      $region54: #{tpu_custom_call.1} parent=5 // pred_check_branch
        %1752 = sbr.rel (%p1750) target = $region56
      $region55: #{tpu_custom_call.1} parent=5 // pred_region
        %s1753 = ssub.s32 %s16, 2
        // Predicated region
        $region57: #{tpu_custom_call.1} parent=55 // pred_check
          %p1754 = pneg %p176
        $region58: #{tpu_custom_call.1} parent=55 // pred_check_branch
          %1756 = sbr.rel (%p1754) target = $region60
        $region59: #{tpu_custom_call.1} parent=55 // pred_region
          %s1757 = sand.u32 %s161, 1
          %s1758 = scalar_lea.sflag [#allocation5], %s1757
          %s1759 = sand.u32 %s161, 1
          %s1760 = smul.addr %s1759, 8
          %s1761 = scalar_lea.vmem [#allocation6], %s1760
          %1763 = dma.done %s1758, 128
        $region60: #{tpu_custom_call.1} parent=55 // pred_fallthru
          _
      $region56: #{tpu_custom_call.1} parent=5 // pred_fallthru
        _
    $region6: #{tpu_custom_call.1} parent=1 // loop_footer
      %s20 = sadd.s32 1, %s16
    $region7: #{tpu_custom_call.1} parent=1 // loop_footer_branch
      %15 = sbr.rel target = $region3
    $region8: #{tpu_custom_call.1} parent=1 // loop_exit
      _
    %1764 = vsyncpa [#allocation4], 1
    %s1765 = scalar_lea.sflag [#allocation4], 1
    %1766 = vsyncpa %s1765, 1
    %1767 = vsyncpa [#allocation5], 1
    %s1768 = scalar_lea.sflag [#allocation5], 1
    %1769 = vsyncpa %s1768, 1

</llo_original>
